<compile_context>
chip_gen: v7x
topology: tpu7x:2x2x1
jax: 0.10.0
libtpu: 0.0.40
codegen_flags: <defaults>
</compile_context>

<pallas_src>
import math

import jax
import jax.numpy as jnp
from jax.experimental import pallas as pl
from jax.experimental.pallas import tpu as pltpu

# ---- small synthetic config (LlamaConfig analog) ----
BATCH = 2
SEQ = 8
HIDDEN = 32
N_HEADS = 4
HEAD_DIM = HIDDEN // N_HEADS      # 8
HALF_DIM = HEAD_DIM // 2          # 4
INTERMEDIATE = 64
RMS_EPS = 1e-6
ROPE_THETA = 10000.0
DTYPE = jnp.float32
MM_DT = jnp.bfloat16              # MXU operand dtype (f32 accumulation kept)
NEG_BIAS = -1e9                   # additive causal bias (robust, not finfo.min)


# ----------------------------- fused Pallas kernel -----------------------------

def _decoder_layer_kernel(x_ref, wqkv_ref, wo_ref, wg_ref, wu_ref, wd_ref,
                          ln1_ref, ln2_ref, cos_ref, sin_ref,
                          out_ref, kc_ref, vc_ref, ctx_ref):
    """One grid step == one batch element: x_ref is [S, H]."""
    f32 = jnp.float32
    x = x_ref[...].astype(f32)                               # [S, H]
    s_len, h = x.shape

    # ---- input RMSNorm (f32 statistics) ----
    inv = jax.lax.rsqrt(jnp.mean(x * x, axis=-1, keepdims=True) + RMS_EPS)
    hn = (x * inv * ln1_ref[...].astype(f32)).astype(MM_DT)

    # ---- fused QKV projection: one bf16 matmul, f32 accumulation ----
    qkv = jnp.dot(hn, wqkv_ref[...], preferred_element_type=f32)     # [S, 3H] f32

    # ---- RoPE half-tables, broadcast across heads inside the kernel ----
    cos = cos_ref[...].astype(f32)                           # [S, D/2]
    sin = sin_ref[...].astype(f32)                           # [S, D/2]

    # ---- causal additive bias (computed once, reused by every head) ----
    row = jax.lax.broadcasted_iota(jnp.int32, (s_len, s_len), 0)
    col = jax.lax.broadcasted_iota(jnp.int32, (s_len, s_len), 1)
    bias = jnp.where(col <= row, jnp.float32(0.0), jnp.float32(NEG_BIAS))

    scale = 1.0 / math.sqrt(HEAD_DIM)
    dn = (((1,), (1,)), ((), ()))                            # contract on last dim

    # TODO(synk): at real head counts use a grid axis over heads (this static
    # unroll is fine for 4 heads but would blow vreg live ranges at 32+).
    for hd in range(N_HEADS):
        lo = hd * HEAD_DIM
        q1 = qkv[:, lo:lo + HALF_DIM]
        q2 = qkv[:, lo + HALF_DIM:lo + HEAD_DIM]
        k1 = qkv[:, h + lo:h + lo + HALF_DIM]
        k2 = qkv[:, h + lo + HALF_DIM:h + lo + HEAD_DIM]
        v_h = qkv[:, 2 * h + lo:2 * h + lo + HEAD_DIM]

        # RoPE in half-split form (VPU only); 1/sqrt(D) folded into q here.
        qr1 = (q1 * cos - q2 * sin) * scale
        qr2 = (q2 * cos + q1 * sin) * scale
        kr1 = k1 * cos - k2 * sin
        kr2 = k2 * cos + k1 * sin

        # KV cache written directly in consumer layout [B, NH, S, D].
        kc_ref[0, hd, :, 0:HALF_DIM] = kr1.astype(kc_ref.dtype)
        kc_ref[0, hd, :, HALF_DIM:HEAD_DIM] = kr2.astype(kc_ref.dtype)
        vc_ref[0, hd, :, :] = v_h.astype(vc_ref.dtype)

        # scores [S, S]: two half-depth contractions (avoids materializing the
        # rotated vectors / any lane shuffle); f32 accumulation.
        sc = (jax.lax.dot_general(qr1.astype(MM_DT), kr1.astype(MM_DT), dn,
                                  preferred_element_type=f32)
              + jax.lax.dot_general(qr2.astype(MM_DT), kr2.astype(MM_DT), dn,
                                    preferred_element_type=f32)
              + bias)

        m = jnp.max(sc, axis=-1, keepdims=True)
        p = jnp.exp(sc - m)
        l = jnp.sum(p, axis=-1, keepdims=True)
        p = p * pl.reciprocal(l, approx=True)                # EUP reciprocal
        ctx_h = jnp.dot(p.astype(MM_DT), v_h.astype(MM_DT),
                        preferred_element_type=f32)          # [S, D]
        ctx_ref[:, lo:lo + HEAD_DIM] = ctx_h                 # stage in VMEM scratch

    # ---- single fused o_proj with full-H contraction + residual ----
    o = jnp.dot(ctx_ref[...].astype(MM_DT), wo_ref[...], preferred_element_type=f32)
    h1 = x + o

    # ---- post-attention RMSNorm ----
    inv2 = jax.lax.rsqrt(jnp.mean(h1 * h1, axis=-1, keepdims=True) + RMS_EPS)
    hn2 = (h1 * inv2 * ln2_ref[...].astype(f32)).astype(MM_DT)

    # ---- SwiGLU MLP (elementwise in f32, bf16 MXU operands, f32 accum) ----
    g = jnp.dot(hn2, wg_ref[...], preferred_element_type=f32)
    u = jnp.dot(hn2, wu_ref[...], preferred_element_type=f32)
    act = (jax.nn.silu(g) * u).astype(MM_DT)
    d = jnp.dot(act, wd_ref[...], preferred_element_type=f32)

    out_ref[...] = (h1 + d).astype(out_ref.dtype)


# ------------------------------ host-side helpers ------------------------------

def rope_half_tables(seq_len, head_dim):
    """cos/sin of shape [S, head_dim/2] (the concat([freqs, freqs]) halves are equal)."""
    inv_freq = 1.0 / (ROPE_THETA ** (jnp.arange(0, head_dim, 2, dtype=jnp.float32)
                                     / head_dim))
    pos = jnp.arange(seq_len, dtype=jnp.float32)
    freqs = pos[:, None] * inv_freq[None, :]                  # [S, D/2]
    return jnp.cos(freqs), jnp.sin(freqs)


# ------------------------ decoder layer forward (wrapper) ------------------------

def neuron_llama_decoder_layer(hidden_states, params):
    """Mirrors NeuronLlamaDecoderLayer.forward (tp_degree=1, causal self-attn)."""
    b, s, h = hidden_states.shape
    x2d = hidden_states.reshape(b * s, h)
    cos, sin = rope_half_tables(s, HEAD_DIM)                  # [S, D/2] f32

    # Weights cast to bf16 once on the host: halves weight DMA / VMEM residency.
    wqkv = params["wqkv"].astype(MM_DT)
    wo = params["wo"].astype(MM_DT)
    wg = params["wg"].astype(MM_DT)
    wu = params["wu"].astype(MM_DT)
    wd = params["wd"].astype(MM_DT)

    grid_spec = pltpu.PrefetchScalarGridSpec(
        num_scalar_prefetch=0,
        grid=(b,),                                            # per-batch attention
        in_specs=[
            pl.BlockSpec((SEQ, HIDDEN), lambda bb: (bb, 0)),          # x
            pl.BlockSpec((HIDDEN, 3 * HIDDEN), lambda bb: (0, 0)),    # wqkv
            pl.BlockSpec((HIDDEN, HIDDEN), lambda bb: (0, 0)),        # wo
            pl.BlockSpec((HIDDEN, INTERMEDIATE), lambda bb: (0, 0)),  # wg
            pl.BlockSpec((HIDDEN, INTERMEDIATE), lambda bb: (0, 0)),  # wu
            pl.BlockSpec((INTERMEDIATE, HIDDEN), lambda bb: (0, 0)),  # wd
            pl.BlockSpec((1, HIDDEN), lambda bb: (0, 0)),             # input_ln
            pl.BlockSpec((1, HIDDEN), lambda bb: (0, 0)),             # post_ln
            pl.BlockSpec((SEQ, HALF_DIM), lambda bb: (0, 0)),         # cos half-table
            pl.BlockSpec((SEQ, HALF_DIM), lambda bb: (0, 0)),         # sin half-table
        ],
        out_specs=[
            pl.BlockSpec((SEQ, HIDDEN), lambda bb: (bb, 0)),                  # out
            pl.BlockSpec((1, N_HEADS, SEQ, HEAD_DIM), lambda bb: (bb, 0, 0, 0)),  # K
            pl.BlockSpec((1, N_HEADS, SEQ, HEAD_DIM), lambda bb: (bb, 0, 0, 0)),  # V
        ],
        scratch_shapes=[pltpu.VMEM((SEQ, HIDDEN), jnp.float32)],      # ctx staging
    )

    out2d, k_cache, v_cache = pl.pallas_call(
        _decoder_layer_kernel,
        out_shape=(
            jax.ShapeDtypeStruct((b * s, h), hidden_states.dtype),
            jax.ShapeDtypeStruct((b, N_HEADS, s, HEAD_DIM), hidden_states.dtype),
            jax.ShapeDtypeStruct((b, N_HEADS, s, HEAD_DIM), hidden_states.dtype),
        ),
        grid_spec=grid_spec,
        compiler_params=pltpu.CompilerParams(
            dimension_semantics=("parallel",)),               # 2 TCs on v7x
    )(x2d, wqkv, wo, wg, wu, wd,
      params["input_ln"], params["post_ln"], cos, sin)

    return out2d.reshape(b, s, h), (k_cache, v_cache)


# --------------------------------- main ---------------------------------

if __name__ == "__main__":
    key = jax.random.PRNGKey(0)
    ks = jax.random.split(key, 8)
    scale = 0.02
    wq = jax.random.normal(ks[0], (HIDDEN, HIDDEN), DTYPE) * scale
    wk = jax.random.normal(ks[1], (HIDDEN, HIDDEN), DTYPE) * scale
    wv = jax.random.normal(ks[2], (HIDDEN, HIDDEN), DTYPE) * scale
    params = {
        "input_ln": jnp.ones((1, HIDDEN), DTYPE),
        "post_ln": jnp.ones((1, HIDDEN), DTYPE),
        "wqkv": jnp.concatenate([wq, wk, wv], axis=1),        # offline-fused QKV
        "wo": jax.random.normal(ks[3], (HIDDEN, HIDDEN), DTYPE) * scale,
        "wg": jax.random.normal(ks[4], (HIDDEN, INTERMEDIATE), DTYPE) * scale,
        "wu": jax.random.normal(ks[5], (HIDDEN, INTERMEDIATE), DTYPE) * scale,
        "wd": jax.random.normal(ks[6], (INTERMEDIATE, HIDDEN), DTYPE) * scale,
    }
    hidden_states = jax.random.normal(ks[7], (BATCH, SEQ, HIDDEN), DTYPE)

    out, (k_cache, v_cache) = neuron_llama_decoder_layer(hidden_states, params)
    jax.block_until_ready(out)
    jax.block_until_ready(k_cache)
    jax.block_until_ready(v_cache)

    assert out.shape == (BATCH, SEQ, HIDDEN)
    assert k_cache.shape == (BATCH, N_HEADS, SEQ, HEAD_DIM)
    assert v_cache.shape == (BATCH, N_HEADS, SEQ, HEAD_DIM)
    assert bool(jnp.all(jnp.isfinite(out)))
    assert bool(jnp.all(jnp.isfinite(k_cache)))
    assert bool(jnp.all(jnp.isfinite(v_cache)))
    print("KERNEL_OK")
</pallas_src>

<mosaic_0001>
module attributes {stable_mosaic.version = 11 : i64} {
  func.func @_decoder_layer_kernel(%arg0: i32, %arg1: memref<8x32xf32, #tpu.memory_space<vmem>>, %arg2: memref<32x96xbf16, #tpu.memory_space<vmem>>, %arg3: memref<32x32xbf16, #tpu.memory_space<vmem>>, %arg4: memref<32x64xbf16, #tpu.memory_space<vmem>>, %arg5: memref<32x64xbf16, #tpu.memory_space<vmem>>, %arg6: memref<64x32xbf16, #tpu.memory_space<vmem>>, %arg7: memref<1x32xf32, #tpu.memory_space<vmem>>, %arg8: memref<1x32xf32, #tpu.memory_space<vmem>>, %arg9: memref<8x4xf32, #tpu.memory_space<vmem>>, %arg10: memref<8x4xf32, #tpu.memory_space<vmem>>, %arg11: memref<8x32xf32, #tpu.memory_space<vmem>>, %arg12: memref<1x4x8x8xf32, #tpu.memory_space<vmem>>, %arg13: memref<1x4x8x8xf32, #tpu.memory_space<vmem>>, %arg14: memref<8x32xf32, #tpu.memory_space<vmem>>) attributes {dimension_semantics = [#tpu.dimension_semantics<parallel>], iteration_bounds = array<i64: 2>, scalar_prefetch = 0 : i64, scratch_operands = 1 : i64, tpu.core_type = #tpu.core_type<tc>, window_params = [{transform_indices = @transform_0, window_bounds = array<i64: 8, 32>}, {pipeline_mode = #tpu.pipeline_mode<synchronous>, transform_indices = @transform_1, window_bounds = array<i64: 32, 96>}, {pipeline_mode = #tpu.pipeline_mode<synchronous>, transform_indices = @transform_2, window_bounds = array<i64: 32, 32>}, {pipeline_mode = #tpu.pipeline_mode<synchronous>, transform_indices = @transform_3, window_bounds = array<i64: 32, 64>}, {pipeline_mode = #tpu.pipeline_mode<synchronous>, transform_indices = @transform_4, window_bounds = array<i64: 32, 64>}, {pipeline_mode = #tpu.pipeline_mode<synchronous>, transform_indices = @transform_5, window_bounds = array<i64: 64, 32>}, {pipeline_mode = #tpu.pipeline_mode<synchronous>, transform_indices = @transform_6, window_bounds = array<i64: 1, 32>}, {pipeline_mode = #tpu.pipeline_mode<synchronous>, transform_indices = @transform_7, window_bounds = array<i64: 1, 32>}, {pipeline_mode = #tpu.pipeline_mode<synchronous>, transform_indices = @transform_8, window_bounds = array<i64: 8, 4>}, {pipeline_mode = #tpu.pipeline_mode<synchronous>, transform_indices = @transform_9, window_bounds = array<i64: 8, 4>}, {transform_indices = @transform_10, window_bounds = array<i64: 8, 32>}, {transform_indices = @transform_11, window_bounds = array<i64: 1, 4, 8, 8>}, {transform_indices = @transform_12, window_bounds = array<i64: 1, 4, 8, 8>}]} {
    %c0 = arith.constant 0 : index
    %c0_0 = arith.constant 0 : index
    %0 = vector.load %arg1[%c0, %c0_0] : memref<8x32xf32, #tpu.memory_space<vmem>>, vector<8x32xf32>
    %1 = arith.mulf %0, %0 : vector<8x32xf32>
    %cst = arith.constant dense<0.000000e+00> : vector<8xf32>
    %2 = vector.multi_reduction <add>, %1, %cst [1] : vector<8x32xf32> to vector<8xf32>
    %3 = vector.shape_cast %2 : vector<8xf32> to vector<8x1xf32>
    %cst_1 = arith.constant 3.200000e+01 : f32
    %4 = vector.broadcast %cst_1 : f32 to vector<8x1xf32>
    %5 = arith.divf %3, %4 : vector<8x1xf32>
    %cst_2 = arith.constant 9.99999997E-7 : f32
    %6 = vector.broadcast %cst_2 : f32 to vector<8x1xf32>
    %7 = arith.addf %5, %6 : vector<8x1xf32>
    %8 = math.rsqrt %7 : vector<8x1xf32>
    %9 = vector.broadcast %8 : vector<8x1xf32> to vector<8x32xf32>
    %10 = arith.mulf %0, %9 : vector<8x32xf32>
    %c0_3 = arith.constant 0 : index
    %c0_4 = arith.constant 0 : index
    %11 = vector.load %arg7[%c0_3, %c0_4] : memref<1x32xf32, #tpu.memory_space<vmem>>, vector<1x32xf32>
    %12 = vector.broadcast %11 : vector<1x32xf32> to vector<8x32xf32>
    %13 = arith.mulf %10, %12 : vector<8x32xf32>
    %14 = arith.truncf %13 : vector<8x32xf32> to vector<8x32xbf16>
    %c0_5 = arith.constant 0 : index
    %c0_6 = arith.constant 0 : index
    %15 = vector.load %arg2[%c0_5, %c0_6] : memref<32x96xbf16, #tpu.memory_space<vmem>>, vector<32x96xbf16>
    %cst_7 = arith.constant dense<0.000000e+00> : vector<8x96xf32>
    %16 = tpu.matmul %14, %15, %cst_7 {dimension_numbers = #tpu.dot_dimension_numbers<[1], [0], [0], [1], [0, 0, 1, 1], [], []>} : vector<8x32xbf16>, vector<32x96xbf16>, vector<8x96xf32> -> vector<8x96xf32>
    %c0_8 = arith.constant 0 : index
    %c0_9 = arith.constant 0 : index
    %17 = vector.load %arg9[%c0_8, %c0_9] : memref<8x4xf32, #tpu.memory_space<vmem>>, vector<8x4xf32>
    %c0_10 = arith.constant 0 : index
    %c0_11 = arith.constant 0 : index
    %18 = vector.load %arg10[%c0_10, %c0_11] : memref<8x4xf32, #tpu.memory_space<vmem>>, vector<8x4xf32>
    %19 = tpu.iota {dimensions = array<i32: 0>} : vector<8x8xi32>
    %20 = tpu.iota {dimensions = array<i32: 1>} : vector<8x8xi32>
    %21 = arith.cmpi sle, %20, %19 : vector<8x8xi32>
    %cst_12 = arith.constant 0.000000e+00 : f32
    %cst_13 = arith.constant -1.000000e+09 : f32
    %22 = vector.broadcast %cst_12 : f32 to vector<8x8xf32>
    %23 = vector.broadcast %cst_13 : f32 to vector<8x8xf32>
    %24 = arith.select %21, %22, %23 : vector<8x8xi1>, vector<8x8xf32>
    %25 = vector.extract_strided_slice %16 {offsets = [0, 0], sizes = [8, 4], strides = [1, 1]} : vector<8x96xf32> to vector<8x4xf32>
    %26 = vector.extract_strided_slice %16 {offsets = [0, 4], sizes = [8, 4], strides = [1, 1]} : vector<8x96xf32> to vector<8x4xf32>
    %27 = vector.extract_strided_slice %16 {offsets = [0, 32], sizes = [8, 4], strides = [1, 1]} : vector<8x96xf32> to vector<8x4xf32>
    %28 = vector.extract_strided_slice %16 {offsets = [0, 36], sizes = [8, 4], strides = [1, 1]} : vector<8x96xf32> to vector<8x4xf32>
    %29 = vector.extract_strided_slice %16 {offsets = [0, 64], sizes = [8, 8], strides = [1, 1]} : vector<8x96xf32> to vector<8x8xf32>
    %30 = arith.mulf %25, %17 : vector<8x4xf32>
    %31 = arith.mulf %26, %18 : vector<8x4xf32>
    %32 = arith.subf %30, %31 : vector<8x4xf32>
    %cst_14 = arith.constant 0.353553385 : f32
    %33 = vector.broadcast %cst_14 : f32 to vector<8x4xf32>
    %34 = arith.mulf %32, %33 : vector<8x4xf32>
    %35 = arith.mulf %26, %17 : vector<8x4xf32>
    %36 = arith.mulf %25, %18 : vector<8x4xf32>
    %37 = arith.addf %35, %36 : vector<8x4xf32>
    %cst_15 = arith.constant 0.353553385 : f32
    %38 = vector.broadcast %cst_15 : f32 to vector<8x4xf32>
    %39 = arith.mulf %37, %38 : vector<8x4xf32>
    %40 = arith.mulf %27, %17 : vector<8x4xf32>
    %41 = arith.mulf %28, %18 : vector<8x4xf32>
    %42 = arith.subf %40, %41 : vector<8x4xf32>
    %43 = arith.mulf %28, %17 : vector<8x4xf32>
    %44 = arith.mulf %27, %18 : vector<8x4xf32>
    %45 = arith.addf %43, %44 : vector<8x4xf32>
    %c0_16 = arith.constant 0 : index
    %c0_17 = arith.constant 0 : index
    %c0_18 = arith.constant 0 : index
    %c0_19 = arith.constant 0 : index
    %46 = vector.load %arg12[%c0_16, %c0_17, %c0_18, %c0_19] : memref<1x4x8x8xf32, #tpu.memory_space<vmem>>, vector<1x1x8x4xf32>
    %47 = vector.shape_cast %46 : vector<1x1x8x4xf32> to vector<8x4xf32>
    %48 = vector.shape_cast %42 : vector<8x4xf32> to vector<1x1x8x4xf32>
    tpu.vector_store %arg12[%c0_16, %c0_17, %c0_18, %c0_19], %48 {strides = array<i32>} : memref<1x4x8x8xf32, #tpu.memory_space<vmem>>, vector<1x1x8x4xf32>,
    %c0_20 = arith.constant 0 : index
    %c0_21 = arith.constant 0 : index
    %c0_22 = arith.constant 0 : index
    %c4 = arith.constant 4 : index
    %49 = vector.load %arg12[%c0_20, %c0_21, %c0_22, %c4] : memref<1x4x8x8xf32, #tpu.memory_space<vmem>>, vector<1x1x8x4xf32>
    %50 = vector.shape_cast %49 : vector<1x1x8x4xf32> to vector<8x4xf32>
    %51 = vector.shape_cast %45 : vector<8x4xf32> to vector<1x1x8x4xf32>
    tpu.vector_store %arg12[%c0_20, %c0_21, %c0_22, %c4], %51 {strides = array<i32>} : memref<1x4x8x8xf32, #tpu.memory_space<vmem>>, vector<1x1x8x4xf32>,
    %c0_23 = arith.constant 0 : index
    %c0_24 = arith.constant 0 : index
    %c0_25 = arith.constant 0 : index
    %c0_26 = arith.constant 0 : index
    %52 = vector.load %arg13[%c0_23, %c0_24, %c0_25, %c0_26] : memref<1x4x8x8xf32, #tpu.memory_space<vmem>>, vector<1x1x8x8xf32>
    %53 = vector.shape_cast %52 : vector<1x1x8x8xf32> to vector<8x8xf32>
    %54 = vector.shape_cast %29 : vector<8x8xf32> to vector<1x1x8x8xf32>
    tpu.vector_store %arg13[%c0_23, %c0_24, %c0_25, %c0_26], %54 {strides = array<i32>} : memref<1x4x8x8xf32, #tpu.memory_space<vmem>>, vector<1x1x8x8xf32>,
    %55 = arith.truncf %34 : vector<8x4xf32> to vector<8x4xbf16>
    %56 = arith.truncf %42 : vector<8x4xf32> to vector<8x4xbf16>
    %cst_27 = arith.constant dense<0.000000e+00> : vector<8x8xf32>
    %57 = tpu.matmul %55, %56, %cst_27 {dimension_numbers = #tpu.dot_dimension_numbers<[1], [1], [0], [0], [0, 0, 1, 0], [], []>} : vector<8x4xbf16>, vector<8x4xbf16>, vector<8x8xf32> -> vector<8x8xf32>
    %58 = arith.truncf %39 : vector<8x4xf32> to vector<8x4xbf16>
    %59 = arith.truncf %45 : vector<8x4xf32> to vector<8x4xbf16>
    %cst_28 = arith.constant dense<0.000000e+00> : vector<8x8xf32>
    %60 = tpu.matmul %58, %59, %cst_28 {dimension_numbers = #tpu.dot_dimension_numbers<[1], [1], [0], [0], [0, 0, 1, 0], [], []>} : vector<8x4xbf16>, vector<8x4xbf16>, vector<8x8xf32> -> vector<8x8xf32>
    %61 = arith.addf %57, %60 : vector<8x8xf32>
    %62 = arith.addf %61, %24 : vector<8x8xf32>
    %cst_29 = arith.constant dense<0xFF800000> : vector<8xf32>
    %63 = vector.multi_reduction <maximumf>, %62, %cst_29 [1] : vector<8x8xf32> to vector<8xf32>
    %64 = vector.shape_cast %63 : vector<8xf32> to vector<8x1xf32>
    %65 = vector.broadcast %64 : vector<8x1xf32> to vector<8x8xf32>
    %66 = arith.subf %62, %65 : vector<8x8xf32>
    %67 = math.exp %66 : vector<8x8xf32>
    %cst_30 = arith.constant dense<0.000000e+00> : vector<8xf32>
    %68 = vector.multi_reduction <add>, %67, %cst_30 [1] : vector<8x8xf32> to vector<8xf32>
    %69 = vector.shape_cast %68 : vector<8xf32> to vector<8x1xf32>
    %70 = tpu.reciprocal %69 {approx = true} : vector<8x1xf32> -> vector<8x1xf32>
    %71 = vector.broadcast %70 : vector<8x1xf32> to vector<8x8xf32>
    %72 = arith.mulf %67, %71 : vector<8x8xf32>
    %73 = arith.truncf %72 : vector<8x8xf32> to vector<8x8xbf16>
    %74 = arith.truncf %29 : vector<8x8xf32> to vector<8x8xbf16>
    %cst_31 = arith.constant dense<0.000000e+00> : vector<8x8xf32>
    %75 = tpu.matmul %73, %74, %cst_31 {dimension_numbers = #tpu.dot_dimension_numbers<[1], [0], [0], [1], [0, 0, 1, 1], [], []>} : vector<8x8xbf16>, vector<8x8xbf16>, vector<8x8xf32> -> vector<8x8xf32>
    %c0_32 = arith.constant 0 : index
    %c0_33 = arith.constant 0 : index
    %76 = vector.load %arg14[%c0_32, %c0_33] : memref<8x32xf32, #tpu.memory_space<vmem>>, vector<8x8xf32>
    tpu.vector_store %arg14[%c0_32, %c0_33], %75 {strides = array<i32>} : memref<8x32xf32, #tpu.memory_space<vmem>>, vector<8x8xf32>,
    %77 = vector.extract_strided_slice %16 {offsets = [0, 8], sizes = [8, 4], strides = [1, 1]} : vector<8x96xf32> to vector<8x4xf32>
    %78 = vector.extract_strided_slice %16 {offsets = [0, 12], sizes = [8, 4], strides = [1, 1]} : vector<8x96xf32> to vector<8x4xf32>
    %79 = vector.extract_strided_slice %16 {offsets = [0, 40], sizes = [8, 4], strides = [1, 1]} : vector<8x96xf32> to vector<8x4xf32>
    %80 = vector.extract_strided_slice %16 {offsets = [0, 44], sizes = [8, 4], strides = [1, 1]} : vector<8x96xf32> to vector<8x4xf32>
    %81 = vector.extract_strided_slice %16 {offsets = [0, 72], sizes = [8, 8], strides = [1, 1]} : vector<8x96xf32> to vector<8x8xf32>
    %82 = arith.mulf %77, %17 : vector<8x4xf32>
    %83 = arith.mulf %78, %18 : vector<8x4xf32>
    %84 = arith.subf %82, %83 : vector<8x4xf32>
    %cst_34 = arith.constant 0.353553385 : f32
    %85 = vector.broadcast %cst_34 : f32 to vector<8x4xf32>
    %86 = arith.mulf %84, %85 : vector<8x4xf32>
    %87 = arith.mulf %78, %17 : vector<8x4xf32>
    %88 = arith.mulf %77, %18 : vector<8x4xf32>
    %89 = arith.addf %87, %88 : vector<8x4xf32>
    %cst_35 = arith.constant 0.353553385 : f32
    %90 = vector.broadcast %cst_35 : f32 to vector<8x4xf32>
    %91 = arith.mulf %89, %90 : vector<8x4xf32>
    %92 = arith.mulf %79, %17 : vector<8x4xf32>
    %93 = arith.mulf %80, %18 : vector<8x4xf32>
    %94 = arith.subf %92, %93 : vector<8x4xf32>
    %95 = arith.mulf %80, %17 : vector<8x4xf32>
    %96 = arith.mulf %79, %18 : vector<8x4xf32>
    %97 = arith.addf %95, %96 : vector<8x4xf32>
    %c0_36 = arith.constant 0 : index
    %c1 = arith.constant 1 : index
    %c0_37 = arith.constant 0 : index
    %c0_38 = arith.constant 0 : index
    %98 = vector.load %arg12[%c0_36, %c1, %c0_37, %c0_38] : memref<1x4x8x8xf32, #tpu.memory_space<vmem>>, vector<1x1x8x4xf32>
    %99 = vector.shape_cast %98 : vector<1x1x8x4xf32> to vector<8x4xf32>
    %100 = vector.shape_cast %94 : vector<8x4xf32> to vector<1x1x8x4xf32>
    tpu.vector_store %arg12[%c0_36, %c1, %c0_37, %c0_38], %100 {strides = array<i32>} : memref<1x4x8x8xf32, #tpu.memory_space<vmem>>, vector<1x1x8x4xf32>,
    %c0_39 = arith.constant 0 : index
    %c1_40 = arith.constant 1 : index
    %c0_41 = arith.constant 0 : index
    %c4_42 = arith.constant 4 : index
    %101 = vector.load %arg12[%c0_39, %c1_40, %c0_41, %c4_42] : memref<1x4x8x8xf32, #tpu.memory_space<vmem>>, vector<1x1x8x4xf32>
    %102 = vector.shape_cast %101 : vector<1x1x8x4xf32> to vector<8x4xf32>
    %103 = vector.shape_cast %97 : vector<8x4xf32> to vector<1x1x8x4xf32>
    tpu.vector_store %arg12[%c0_39, %c1_40, %c0_41, %c4_42], %103 {strides = array<i32>} : memref<1x4x8x8xf32, #tpu.memory_space<vmem>>, vector<1x1x8x4xf32>,
    %c0_43 = arith.constant 0 : index
    %c1_44 = arith.constant 1 : index
    %c0_45 = arith.constant 0 : index
    %c0_46 = arith.constant 0 : index
    %104 = vector.load %arg13[%c0_43, %c1_44, %c0_45, %c0_46] : memref<1x4x8x8xf32, #tpu.memory_space<vmem>>, vector<1x1x8x8xf32>
    %105 = vector.shape_cast %104 : vector<1x1x8x8xf32> to vector<8x8xf32>
    %106 = vector.shape_cast %81 : vector<8x8xf32> to vector<1x1x8x8xf32>
    tpu.vector_store %arg13[%c0_43, %c1_44, %c0_45, %c0_46], %106 {strides = array<i32>} : memref<1x4x8x8xf32, #tpu.memory_space<vmem>>, vector<1x1x8x8xf32>,
    %107 = arith.truncf %86 : vector<8x4xf32> to vector<8x4xbf16>
    %108 = arith.truncf %94 : vector<8x4xf32> to vector<8x4xbf16>
    %cst_47 = arith.constant dense<0.000000e+00> : vector<8x8xf32>
    %109 = tpu.matmul %107, %108, %cst_47 {dimension_numbers = #tpu.dot_dimension_numbers<[1], [1], [0], [0], [0, 0, 1, 0], [], []>} : vector<8x4xbf16>, vector<8x4xbf16>, vector<8x8xf32> -> vector<8x8xf32>
    %110 = arith.truncf %91 : vector<8x4xf32> to vector<8x4xbf16>
    %111 = arith.truncf %97 : vector<8x4xf32> to vector<8x4xbf16>
    %cst_48 = arith.constant dense<0.000000e+00> : vector<8x8xf32>
    %112 = tpu.matmul %110, %111, %cst_48 {dimension_numbers = #tpu.dot_dimension_numbers<[1], [1], [0], [0], [0, 0, 1, 0], [], []>} : vector<8x4xbf16>, vector<8x4xbf16>, vector<8x8xf32> -> vector<8x8xf32>
    %113 = arith.addf %109, %112 : vector<8x8xf32>
    %114 = arith.addf %113, %24 : vector<8x8xf32>
    %cst_49 = arith.constant dense<0xFF800000> : vector<8xf32>
    %115 = vector.multi_reduction <maximumf>, %114, %cst_49 [1] : vector<8x8xf32> to vector<8xf32>
    %116 = vector.shape_cast %115 : vector<8xf32> to vector<8x1xf32>
    %117 = vector.broadcast %116 : vector<8x1xf32> to vector<8x8xf32>
    %118 = arith.subf %114, %117 : vector<8x8xf32>
    %119 = math.exp %118 : vector<8x8xf32>
    %cst_50 = arith.constant dense<0.000000e+00> : vector<8xf32>
    %120 = vector.multi_reduction <add>, %119, %cst_50 [1] : vector<8x8xf32> to vector<8xf32>
    %121 = vector.shape_cast %120 : vector<8xf32> to vector<8x1xf32>
    %122 = tpu.reciprocal %121 {approx = true} : vector<8x1xf32> -> vector<8x1xf32>
    %123 = vector.broadcast %122 : vector<8x1xf32> to vector<8x8xf32>
    %124 = arith.mulf %119, %123 : vector<8x8xf32>
    %125 = arith.truncf %124 : vector<8x8xf32> to vector<8x8xbf16>
    %126 = arith.truncf %81 : vector<8x8xf32> to vector<8x8xbf16>
    %cst_51 = arith.constant dense<0.000000e+00> : vector<8x8xf32>
    %127 = tpu.matmul %125, %126, %cst_51 {dimension_numbers = #tpu.dot_dimension_numbers<[1], [0], [0], [1], [0, 0, 1, 1], [], []>} : vector<8x8xbf16>, vector<8x8xbf16>, vector<8x8xf32> -> vector<8x8xf32>
    %c0_52 = arith.constant 0 : index
    %c8 = arith.constant 8 : index
    %128 = vector.load %arg14[%c0_52, %c8] : memref<8x32xf32, #tpu.memory_space<vmem>>, vector<8x8xf32>
    tpu.vector_store %arg14[%c0_52, %c8], %127 {strides = array<i32>} : memref<8x32xf32, #tpu.memory_space<vmem>>, vector<8x8xf32>,
    %129 = vector.extract_strided_slice %16 {offsets = [0, 16], sizes = [8, 4], strides = [1, 1]} : vector<8x96xf32> to vector<8x4xf32>
    %130 = vector.extract_strided_slice %16 {offsets = [0, 20], sizes = [8, 4], strides = [1, 1]} : vector<8x96xf32> to vector<8x4xf32>
    %131 = vector.extract_strided_slice %16 {offsets = [0, 48], sizes = [8, 4], strides = [1, 1]} : vector<8x96xf32> to vector<8x4xf32>
    %132 = vector.extract_strided_slice %16 {offsets = [0, 52], sizes = [8, 4], strides = [1, 1]} : vector<8x96xf32> to vector<8x4xf32>
    %133 = vector.extract_strided_slice %16 {offsets = [0, 80], sizes = [8, 8], strides = [1, 1]} : vector<8x96xf32> to vector<8x8xf32>
    %134 = arith.mulf %129, %17 : vector<8x4xf32>
    %135 = arith.mulf %130, %18 : vector<8x4xf32>
    %136 = arith.subf %134, %135 : vector<8x4xf32>
    %cst_53 = arith.constant 0.353553385 : f32
    %137 = vector.broadcast %cst_53 : f32 to vector<8x4xf32>
    %138 = arith.mulf %136, %137 : vector<8x4xf32>
    %139 = arith.mulf %130, %17 : vector<8x4xf32>
    %140 = arith.mulf %129, %18 : vector<8x4xf32>
    %141 = arith.addf %139, %140 : vector<8x4xf32>
    %cst_54 = arith.constant 0.353553385 : f32
    %142 = vector.broadcast %cst_54 : f32 to vector<8x4xf32>
    %143 = arith.mulf %141, %142 : vector<8x4xf32>
    %144 = arith.mulf %131, %17 : vector<8x4xf32>
    %145 = arith.mulf %132, %18 : vector<8x4xf32>
    %146 = arith.subf %144, %145 : vector<8x4xf32>
    %147 = arith.mulf %132, %17 : vector<8x4xf32>
    %148 = arith.mulf %131, %18 : vector<8x4xf32>
    %149 = arith.addf %147, %148 : vector<8x4xf32>
    %c0_55 = arith.constant 0 : index
    %c2 = arith.constant 2 : index
    %c0_56 = arith.constant 0 : index
    %c0_57 = arith.constant 0 : index
    %150 = vector.load %arg12[%c0_55, %c2, %c0_56, %c0_57] : memref<1x4x8x8xf32, #tpu.memory_space<vmem>>, vector<1x1x8x4xf32>
    %151 = vector.shape_cast %150 : vector<1x1x8x4xf32> to vector<8x4xf32>
    %152 = vector.shape_cast %146 : vector<8x4xf32> to vector<1x1x8x4xf32>
    tpu.vector_store %arg12[%c0_55, %c2, %c0_56, %c0_57], %152 {strides = array<i32>} : memref<1x4x8x8xf32, #tpu.memory_space<vmem>>, vector<1x1x8x4xf32>,
    %c0_58 = arith.constant 0 : index
    %c2_59 = arith.constant 2 : index
    %c0_60 = arith.constant 0 : index
    %c4_61 = arith.constant 4 : index
    %153 = vector.load %arg12[%c0_58, %c2_59, %c0_60, %c4_61] : memref<1x4x8x8xf32, #tpu.memory_space<vmem>>, vector<1x1x8x4xf32>
    %154 = vector.shape_cast %153 : vector<1x1x8x4xf32> to vector<8x4xf32>
    %155 = vector.shape_cast %149 : vector<8x4xf32> to vector<1x1x8x4xf32>
    tpu.vector_store %arg12[%c0_58, %c2_59, %c0_60, %c4_61], %155 {strides = array<i32>} : memref<1x4x8x8xf32, #tpu.memory_space<vmem>>, vector<1x1x8x4xf32>,
    %c0_62 = arith.constant 0 : index
    %c2_63 = arith.constant 2 : index
    %c0_64 = arith.constant 0 : index
    %c0_65 = arith.constant 0 : index
    %156 = vector.load %arg13[%c0_62, %c2_63, %c0_64, %c0_65] : memref<1x4x8x8xf32, #tpu.memory_space<vmem>>, vector<1x1x8x8xf32>
    %157 = vector.shape_cast %156 : vector<1x1x8x8xf32> to vector<8x8xf32>
    %158 = vector.shape_cast %133 : vector<8x8xf32> to vector<1x1x8x8xf32>
    tpu.vector_store %arg13[%c0_62, %c2_63, %c0_64, %c0_65], %158 {strides = array<i32>} : memref<1x4x8x8xf32, #tpu.memory_space<vmem>>, vector<1x1x8x8xf32>,
    %159 = arith.truncf %138 : vector<8x4xf32> to vector<8x4xbf16>
    %160 = arith.truncf %146 : vector<8x4xf32> to vector<8x4xbf16>
    %cst_66 = arith.constant dense<0.000000e+00> : vector<8x8xf32>
    %161 = tpu.matmul %159, %160, %cst_66 {dimension_numbers = #tpu.dot_dimension_numbers<[1], [1], [0], [0], [0, 0, 1, 0], [], []>} : vector<8x4xbf16>, vector<8x4xbf16>, vector<8x8xf32> -> vector<8x8xf32>
    %162 = arith.truncf %143 : vector<8x4xf32> to vector<8x4xbf16>
    %163 = arith.truncf %149 : vector<8x4xf32> to vector<8x4xbf16>
    %cst_67 = arith.constant dense<0.000000e+00> : vector<8x8xf32>
    %164 = tpu.matmul %162, %163, %cst_67 {dimension_numbers = #tpu.dot_dimension_numbers<[1], [1], [0], [0], [0, 0, 1, 0], [], []>} : vector<8x4xbf16>, vector<8x4xbf16>, vector<8x8xf32> -> vector<8x8xf32>
    %165 = arith.addf %161, %164 : vector<8x8xf32>
    %166 = arith.addf %165, %24 : vector<8x8xf32>
    %cst_68 = arith.constant dense<0xFF800000> : vector<8xf32>
    %167 = vector.multi_reduction <maximumf>, %166, %cst_68 [1] : vector<8x8xf32> to vector<8xf32>
    %168 = vector.shape_cast %167 : vector<8xf32> to vector<8x1xf32>
    %169 = vector.broadcast %168 : vector<8x1xf32> to vector<8x8xf32>
    %170 = arith.subf %166, %169 : vector<8x8xf32>
    %171 = math.exp %170 : vector<8x8xf32>
    %cst_69 = arith.constant dense<0.000000e+00> : vector<8xf32>
    %172 = vector.multi_reduction <add>, %171, %cst_69 [1] : vector<8x8xf32> to vector<8xf32>
    %173 = vector.shape_cast %172 : vector<8xf32> to vector<8x1xf32>
    %174 = tpu.reciprocal %173 {approx = true} : vector<8x1xf32> -> vector<8x1xf32>
    %175 = vector.broadcast %174 : vector<8x1xf32> to vector<8x8xf32>
    %176 = arith.mulf %171, %175 : vector<8x8xf32>
    %177 = arith.truncf %176 : vector<8x8xf32> to vector<8x8xbf16>
    %178 = arith.truncf %133 : vector<8x8xf32> to vector<8x8xbf16>
    %cst_70 = arith.constant dense<0.000000e+00> : vector<8x8xf32>
    %179 = tpu.matmul %177, %178, %cst_70 {dimension_numbers = #tpu.dot_dimension_numbers<[1], [0], [0], [1], [0, 0, 1, 1], [], []>} : vector<8x8xbf16>, vector<8x8xbf16>, vector<8x8xf32> -> vector<8x8xf32>
    %c0_71 = arith.constant 0 : index
    %c16 = arith.constant 16 : index
    %180 = vector.load %arg14[%c0_71, %c16] : memref<8x32xf32, #tpu.memory_space<vmem>>, vector<8x8xf32>
    tpu.vector_store %arg14[%c0_71, %c16], %179 {strides = array<i32>} : memref<8x32xf32, #tpu.memory_space<vmem>>, vector<8x8xf32>,
    %181 = vector.extract_strided_slice %16 {offsets = [0, 24], sizes = [8, 4], strides = [1, 1]} : vector<8x96xf32> to vector<8x4xf32>
    %182 = vector.extract_strided_slice %16 {offsets = [0, 28], sizes = [8, 4], strides = [1, 1]} : vector<8x96xf32> to vector<8x4xf32>
    %183 = vector.extract_strided_slice %16 {offsets = [0, 56], sizes = [8, 4], strides = [1, 1]} : vector<8x96xf32> to vector<8x4xf32>
    %184 = vector.extract_strided_slice %16 {offsets = [0, 60], sizes = [8, 4], strides = [1, 1]} : vector<8x96xf32> to vector<8x4xf32>
    %185 = vector.extract_strided_slice %16 {offsets = [0, 88], sizes = [8, 8], strides = [1, 1]} : vector<8x96xf32> to vector<8x8xf32>
    %186 = arith.mulf %181, %17 : vector<8x4xf32>
    %187 = arith.mulf %182, %18 : vector<8x4xf32>
    %188 = arith.subf %186, %187 : vector<8x4xf32>
    %cst_72 = arith.constant 0.353553385 : f32
    %189 = vector.broadcast %cst_72 : f32 to vector<8x4xf32>
    %190 = arith.mulf %188, %189 : vector<8x4xf32>
    %191 = arith.mulf %182, %17 : vector<8x4xf32>
    %192 = arith.mulf %181, %18 : vector<8x4xf32>
    %193 = arith.addf %191, %192 : vector<8x4xf32>
    %cst_73 = arith.constant 0.353553385 : f32
    %194 = vector.broadcast %cst_73 : f32 to vector<8x4xf32>
    %195 = arith.mulf %193, %194 : vector<8x4xf32>
    %196 = arith.mulf %183, %17 : vector<8x4xf32>
    %197 = arith.mulf %184, %18 : vector<8x4xf32>
    %198 = arith.subf %196, %197 : vector<8x4xf32>
    %199 = arith.mulf %184, %17 : vector<8x4xf32>
    %200 = arith.mulf %183, %18 : vector<8x4xf32>
    %201 = arith.addf %199, %200 : vector<8x4xf32>
    %c0_74 = arith.constant 0 : index
    %c3 = arith.constant 3 : index
    %c0_75 = arith.constant 0 : index
    %c0_76 = arith.constant 0 : index
    %202 = vector.load %arg12[%c0_74, %c3, %c0_75, %c0_76] : memref<1x4x8x8xf32, #tpu.memory_space<vmem>>, vector<1x1x8x4xf32>
    %203 = vector.shape_cast %202 : vector<1x1x8x4xf32> to vector<8x4xf32>
    %204 = vector.shape_cast %198 : vector<8x4xf32> to vector<1x1x8x4xf32>
    tpu.vector_store %arg12[%c0_74, %c3, %c0_75, %c0_76], %204 {strides = array<i32>} : memref<1x4x8x8xf32, #tpu.memory_space<vmem>>, vector<1x1x8x4xf32>,
    %c0_77 = arith.constant 0 : index
    %c3_78 = arith.constant 3 : index
    %c0_79 = arith.constant 0 : index
    %c4_80 = arith.constant 4 : index
    %205 = vector.load %arg12[%c0_77, %c3_78, %c0_79, %c4_80] : memref<1x4x8x8xf32, #tpu.memory_space<vmem>>, vector<1x1x8x4xf32>
    %206 = vector.shape_cast %205 : vector<1x1x8x4xf32> to vector<8x4xf32>
    %207 = vector.shape_cast %201 : vector<8x4xf32> to vector<1x1x8x4xf32>
    tpu.vector_store %arg12[%c0_77, %c3_78, %c0_79, %c4_80], %207 {strides = array<i32>} : memref<1x4x8x8xf32, #tpu.memory_space<vmem>>, vector<1x1x8x4xf32>,
    %c0_81 = arith.constant 0 : index
    %c3_82 = arith.constant 3 : index
    %c0_83 = arith.constant 0 : index
    %c0_84 = arith.constant 0 : index
    %208 = vector.load %arg13[%c0_81, %c3_82, %c0_83, %c0_84] : memref<1x4x8x8xf32, #tpu.memory_space<vmem>>, vector<1x1x8x8xf32>
    %209 = vector.shape_cast %208 : vector<1x1x8x8xf32> to vector<8x8xf32>
    %210 = vector.shape_cast %185 : vector<8x8xf32> to vector<1x1x8x8xf32>
    tpu.vector_store %arg13[%c0_81, %c3_82, %c0_83, %c0_84], %210 {strides = array<i32>} : memref<1x4x8x8xf32, #tpu.memory_space<vmem>>, vector<1x1x8x8xf32>,
    %211 = arith.truncf %190 : vector<8x4xf32> to vector<8x4xbf16>
    %212 = arith.truncf %198 : vector<8x4xf32> to vector<8x4xbf16>
    %cst_85 = arith.constant dense<0.000000e+00> : vector<8x8xf32>
    %213 = tpu.matmul %211, %212, %cst_85 {dimension_numbers = #tpu.dot_dimension_numbers<[1], [1], [0], [0], [0, 0, 1, 0], [], []>} : vector<8x4xbf16>, vector<8x4xbf16>, vector<8x8xf32> -> vector<8x8xf32>
    %214 = arith.truncf %195 : vector<8x4xf32> to vector<8x4xbf16>
    %215 = arith.truncf %201 : vector<8x4xf32> to vector<8x4xbf16>
    %cst_86 = arith.constant dense<0.000000e+00> : vector<8x8xf32>
    %216 = tpu.matmul %214, %215, %cst_86 {dimension_numbers = #tpu.dot_dimension_numbers<[1], [1], [0], [0], [0, 0, 1, 0], [], []>} : vector<8x4xbf16>, vector<8x4xbf16>, vector<8x8xf32> -> vector<8x8xf32>
    %217 = arith.addf %213, %216 : vector<8x8xf32>
    %218 = arith.addf %217, %24 : vector<8x8xf32>
    %cst_87 = arith.constant dense<0xFF800000> : vector<8xf32>
    %219 = vector.multi_reduction <maximumf>, %218, %cst_87 [1] : vector<8x8xf32> to vector<8xf32>
    %220 = vector.shape_cast %219 : vector<8xf32> to vector<8x1xf32>
    %221 = vector.broadcast %220 : vector<8x1xf32> to vector<8x8xf32>
    %222 = arith.subf %218, %221 : vector<8x8xf32>
    %223 = math.exp %222 : vector<8x8xf32>
    %cst_88 = arith.constant dense<0.000000e+00> : vector<8xf32>
    %224 = vector.multi_reduction <add>, %223, %cst_88 [1] : vector<8x8xf32> to vector<8xf32>
    %225 = vector.shape_cast %224 : vector<8xf32> to vector<8x1xf32>
    %226 = tpu.reciprocal %225 {approx = true} : vector<8x1xf32> -> vector<8x1xf32>
    %227 = vector.broadcast %226 : vector<8x1xf32> to vector<8x8xf32>
    %228 = arith.mulf %223, %227 : vector<8x8xf32>
    %229 = arith.truncf %228 : vector<8x8xf32> to vector<8x8xbf16>
    %230 = arith.truncf %185 : vector<8x8xf32> to vector<8x8xbf16>
    %cst_89 = arith.constant dense<0.000000e+00> : vector<8x8xf32>
    %231 = tpu.matmul %229, %230, %cst_89 {dimension_numbers = #tpu.dot_dimension_numbers<[1], [0], [0], [1], [0, 0, 1, 1], [], []>} : vector<8x8xbf16>, vector<8x8xbf16>, vector<8x8xf32> -> vector<8x8xf32>
    %c0_90 = arith.constant 0 : index
    %c24 = arith.constant 24 : index
    %232 = vector.load %arg14[%c0_90, %c24] : memref<8x32xf32, #tpu.memory_space<vmem>>, vector<8x8xf32>
    tpu.vector_store %arg14[%c0_90, %c24], %231 {strides = array<i32>} : memref<8x32xf32, #tpu.memory_space<vmem>>, vector<8x8xf32>,
    %c0_91 = arith.constant 0 : index
    %c0_92 = arith.constant 0 : index
    %233 = vector.load %arg14[%c0_91, %c0_92] : memref<8x32xf32, #tpu.memory_space<vmem>>, vector<8x32xf32>
    %234 = arith.truncf %233 : vector<8x32xf32> to vector<8x32xbf16>
    %c0_93 = arith.constant 0 : index
    %c0_94 = arith.constant 0 : index
    %235 = vector.load %arg3[%c0_93, %c0_94] : memref<32x32xbf16, #tpu.memory_space<vmem>>, vector<32x32xbf16>
    %cst_95 = arith.constant dense<0.000000e+00> : vector<8x32xf32>
    %236 = tpu.matmul %234, %235, %cst_95 {dimension_numbers = #tpu.dot_dimension_numbers<[1], [0], [0], [1], [0, 0, 1, 1], [], []>} : vector<8x32xbf16>, vector<32x32xbf16>, vector<8x32xf32> -> vector<8x32xf32>
    %237 = arith.addf %0, %236 : vector<8x32xf32>
    %238 = arith.mulf %237, %237 : vector<8x32xf32>
    %cst_96 = arith.constant dense<0.000000e+00> : vector<8xf32>
    %239 = vector.multi_reduction <add>, %238, %cst_96 [1] : vector<8x32xf32> to vector<8xf32>
    %240 = vector.shape_cast %239 : vector<8xf32> to vector<8x1xf32>
    %cst_97 = arith.constant 3.200000e+01 : f32
    %241 = vector.broadcast %cst_97 : f32 to vector<8x1xf32>
    %242 = arith.divf %240, %241 : vector<8x1xf32>
    %cst_98 = arith.constant 9.99999997E-7 : f32
    %243 = vector.broadcast %cst_98 : f32 to vector<8x1xf32>
    %244 = arith.addf %242, %243 : vector<8x1xf32>
    %245 = math.rsqrt %244 : vector<8x1xf32>
    %246 = vector.broadcast %245 : vector<8x1xf32> to vector<8x32xf32>
    %247 = arith.mulf %237, %246 : vector<8x32xf32>
    %c0_99 = arith.constant 0 : index
    %c0_100 = arith.constant 0 : index
    %248 = vector.load %arg8[%c0_99, %c0_100] : memref<1x32xf32, #tpu.memory_space<vmem>>, vector<1x32xf32>
    %249 = vector.broadcast %248 : vector<1x32xf32> to vector<8x32xf32>
    %250 = arith.mulf %247, %249 : vector<8x32xf32>
    %251 = arith.truncf %250 : vector<8x32xf32> to vector<8x32xbf16>
    %c0_101 = arith.constant 0 : index
    %c0_102 = arith.constant 0 : index
    %252 = vector.load %arg4[%c0_101, %c0_102] : memref<32x64xbf16, #tpu.memory_space<vmem>>, vector<32x64xbf16>
    %cst_103 = arith.constant dense<0.000000e+00> : vector<8x64xf32>
    %253 = tpu.matmul %251, %252, %cst_103 {dimension_numbers = #tpu.dot_dimension_numbers<[1], [0], [0], [1], [0, 0, 1, 1], [], []>} : vector<8x32xbf16>, vector<32x64xbf16>, vector<8x64xf32> -> vector<8x64xf32>
    %c0_104 = arith.constant 0 : index
    %c0_105 = arith.constant 0 : index
    %254 = vector.load %arg5[%c0_104, %c0_105] : memref<32x64xbf16, #tpu.memory_space<vmem>>, vector<32x64xbf16>
    %cst_106 = arith.constant dense<0.000000e+00> : vector<8x64xf32>
    %255 = tpu.matmul %251, %254, %cst_106 {dimension_numbers = #tpu.dot_dimension_numbers<[1], [0], [0], [1], [0, 0, 1, 1], [], []>} : vector<8x32xbf16>, vector<32x64xbf16>, vector<8x64xf32> -> vector<8x64xf32>
    %256 = arith.negf %253 : vector<8x64xf32>
    %257 = math.exp %256 : vector<8x64xf32>
    %cst_107 = arith.constant 1.000000e+00 : f32
    %258 = vector.broadcast %cst_107 : f32 to vector<8x64xf32>
    %259 = arith.addf %258, %257 : vector<8x64xf32>
    %260 = arith.divf %258, %259 : vector<8x64xf32>
    %261 = arith.mulf %253, %260 : vector<8x64xf32>
    %262 = arith.mulf %261, %255 : vector<8x64xf32>
    %263 = arith.truncf %262 : vector<8x64xf32> to vector<8x64xbf16>
    %c0_108 = arith.constant 0 : index
    %c0_109 = arith.constant 0 : index
    %264 = vector.load %arg6[%c0_108, %c0_109] : memref<64x32xbf16, #tpu.memory_space<vmem>>, vector<64x32xbf16>
    %cst_110 = arith.constant dense<0.000000e+00> : vector<8x32xf32>
    %265 = tpu.matmul %263, %264, %cst_110 {dimension_numbers = #tpu.dot_dimension_numbers<[1], [0], [0], [1], [0, 0, 1, 1], [], []>} : vector<8x64xbf16>, vector<64x32xbf16>, vector<8x32xf32> -> vector<8x32xf32>
    %266 = arith.addf %237, %265 : vector<8x32xf32>
    %c0_111 = arith.constant 0 : index
    %c0_112 = arith.constant 0 : index
    %267 = vector.load %arg11[%c0_111, %c0_112] : memref<8x32xf32, #tpu.memory_space<vmem>>, vector<8x32xf32>
    tpu.vector_store %arg11[%c0_111, %c0_112], %266 {strides = array<i32>} : memref<8x32xf32, #tpu.memory_space<vmem>>, vector<8x32xf32>,
    return
  }
  func.func @transform_0(%arg0: i32) -> (i32, i32) {
    %c0_i32 = arith.constant 0 : i32
    %c0_i32_0 = arith.constant 0 : i32
    return %arg0, %c0_i32 : i32, i32
  }
  func.func @transform_1(%arg0: i32) -> (i32, i32) {
    %c0_i32 = arith.constant 0 : i32
    %c0_i32_0 = arith.constant 0 : i32
    %c0_i32_1 = arith.constant 0 : i32
    return %c0_i32, %c0_i32_0 : i32, i32
  }
  func.func @transform_2(%arg0: i32) -> (i32, i32) {
    %c0_i32 = arith.constant 0 : i32
    %c0_i32_0 = arith.constant 0 : i32
    %c0_i32_1 = arith.constant 0 : i32
    return %c0_i32, %c0_i32_0 : i32, i32
  }
  func.func @transform_3(%arg0: i32) -> (i32, i32) {
    %c0_i32 = arith.constant 0 : i32
    %c0_i32_0 = arith.constant 0 : i32
    %c0_i32_1 = arith.constant 0 : i32
    return %c0_i32, %c0_i32_0 : i32, i32
  }
  func.func @transform_4(%arg0: i32) -> (i32, i32) {
    %c0_i32 = arith.constant 0 : i32
    %c0_i32_0 = arith.constant 0 : i32
    %c0_i32_1 = arith.constant 0 : i32
    return %c0_i32, %c0_i32_0 : i32, i32
  }
  func.func @transform_5(%arg0: i32) -> (i32, i32) {
    %c0_i32 = arith.constant 0 : i32
    %c0_i32_0 = arith.constant 0 : i32
    %c0_i32_1 = arith.constant 0 : i32
    return %c0_i32, %c0_i32_0 : i32, i32
  }
  func.func @transform_6(%arg0: i32) -> (i32, i32) {
    %c0_i32 = arith.constant 0 : i32
    %c0_i32_0 = arith.constant 0 : i32
    %c0_i32_1 = arith.constant 0 : i32
    return %c0_i32, %c0_i32_0 : i32, i32
  }
  func.func @transform_7(%arg0: i32) -> (i32, i32) {
    %c0_i32 = arith.constant 0 : i32
    %c0_i32_0 = arith.constant 0 : i32
    %c0_i32_1 = arith.constant 0 : i32
    return %c0_i32, %c0_i32_0 : i32, i32
  }
  func.func @transform_8(%arg0: i32) -> (i32, i32) {
    %c0_i32 = arith.constant 0 : i32
    %c0_i32_0 = arith.constant 0 : i32
    %c0_i32_1 = arith.constant 0 : i32
    return %c0_i32, %c0_i32_0 : i32, i32
  }
  func.func @transform_9(%arg0: i32) -> (i32, i32) {
    %c0_i32 = arith.constant 0 : i32
    %c0_i32_0 = arith.constant 0 : i32
    %c0_i32_1 = arith.constant 0 : i32
    return %c0_i32, %c0_i32_0 : i32, i32
  }
  func.func @transform_10(%arg0: i32) -> (i32, i32) {
    %c0_i32 = arith.constant 0 : i32
    %c0_i32_0 = arith.constant 0 : i32
    return %arg0, %c0_i32 : i32, i32
  }
  func.func @transform_11(%arg0: i32) -> (i32, i32, i32, i32) {
    %c0_i32 = arith.constant 0 : i32
    %c0_i32_0 = arith.constant 0 : i32
    %c0_i32_1 = arith.constant 0 : i32
    %c0_i32_2 = arith.constant 0 : i32
    return %arg0, %c0_i32, %c0_i32_0, %c0_i32_1 : i32, i32, i32, i32
  }
  func.func @transform_12(%arg0: i32) -> (i32, i32, i32, i32) {
    %c0_i32 = arith.constant 0 : i32
    %c0_i32_0 = arith.constant 0 : i32
    %c0_i32_1 = arith.constant 0 : i32
    %c0_i32_2 = arith.constant 0 : i32
    return %arg0, %c0_i32, %c0_i32_0, %c0_i32_1 : i32, i32, i32, i32
  }
}

</mosaic_0001>

<llo_original>
// kernel: tpu_custom_call.1
$region0: #{tpu_custom_call.1}
  #allocation0 [shape = 'u32[]', space=smem, size = 0x4, offset = 0x4, fixed_abs, tag = 'smem constant byte address 0x4 - core index']
  #allocation1 [shape = 'u32[144,128]{1,0:T(1,128)}', space=vmem, size = 0x12000, scoped, tag = 'internal scratch']
  #allocation2 [shape = 'f32[8,32]{1,0:T(8,128)}', space=vmem, size = 0x1000, scoped, tag = 'scratch operand']
  %s0 = inlined_call_operand.vmem [shape: f32[16,32], index: 0, kind: input, shape index: {}]
  %s1 = inlined_call_operand.vmem [shape: bf16[32,96], index: 1, kind: input, shape index: {}]
  %s2 = inlined_call_operand.vmem [shape: bf16[32,32], index: 2, kind: input, shape index: {}]
  %s3 = inlined_call_operand.vmem [shape: bf16[32,64], index: 3, kind: input, shape index: {}]
  %s4 = inlined_call_operand.hbm [shape: bf16[32,64], index: 4, kind: input, shape index: {}]
  %s5 = inlined_call_operand.vmem [shape: bf16[64,32], index: 5, kind: input, shape index: {}]
  %s6 = inlined_call_operand.vmem [shape: f32[1,32], index: 6, kind: input, shape index: {}]
  %s7 = inlined_call_operand.vmem [shape: f32[1,32], index: 7, kind: input, shape index: {}]
  %s8 = inlined_call_operand.vmem [shape: f32[8,4], index: 8, kind: input, shape index: {}]
  %s9 = inlined_call_operand.vmem [shape: f32[8,4], index: 9, kind: input, shape index: {}]
  %s10 = inlined_call_operand.hbm [shape: f32[16,32], index: 10, kind: output, shape index: {0}]
  %s11 = inlined_call_operand.hbm [shape: f32[2,4,8,8], index: 11, kind: output, shape index: {1}]
  %s12 = inlined_call_operand.hbm [shape: f32[2,4,8,8], index: 12, kind: output, shape index: {2}]
  %13 = xla_tuple %s10, %s11, %s12
  %s14 = sld [smem:[#allocation0]]
  $region93: #{tpu_custom_call.1} parent=0
    _
  %s16 = ssub.s32 1, %s14
  %s17 = scalar_select 0, %s16, %s14
  $region1: #{tpu_custom_call.1} parent=0
    #allocation3 [shape = 'u8[8192]{0}', space=vmem, size = 0x2000, scoped, tag = 'input window, operand 4, single buffered']
    #allocation4 [shape = 's32[2]{0}', space=sflag, size = 0x8, scoped, tag = 'scoped memory for tpu_custom_call.1']
    #allocation5 [shape = 's32[2]{0}', space=sflag, size = 0x8, scoped, tag = 'scoped memory for tpu_custom_call.1']
    #allocation6 [shape = 'u8[8192]{0}', space=vmem, size = 0x2000, scoped, tag = 'output window, operand 0']
    #allocation7 [shape = 'u8[32768]{0}', space=vmem, size = 0x8000, scoped, tag = 'output window, operand 1']
    #allocation8 [shape = 's32[2]{0}', space=sflag, size = 0x8, scoped, tag = 'scoped memory for tpu_custom_call.1']
    #allocation9 [shape = 'u8[32768]{0}', space=vmem, size = 0x8000, scoped, tag = 'output window, operand 2']
    %18 = vsyncpa [#allocation4], 0
    %19 = vsyncpa [#allocation5], 0
    %s20 = scalar_lea.sflag [#allocation5], 1
    %21 = vsyncpa %s20, 0
    %22 = vsyncpa [#allocation8], 0
    %s23 = scalar_lea.sflag [#allocation8], 1
    %24 = vsyncpa %s23, 0
    loop: start=0, step=1, limit=4
    $region2: #{tpu_custom_call.1} parent=1 // loop_pre_header
      _
    $region3: #{tpu_custom_call.1} parent=1 // loop_header
      %s26 = sphi 0, %s30
      %p27 = scmp.ge.s32.totalorder %s26, 4
      %s36 = sphi 0, %s38
      %s39 = sphi 0, %s36
      %s40 = sphi 0, %s39
      %s56 = sphi 0, %s40
      %s60 = sphi 0, %s60
      %s62 = sphi 0, %s60
      %s63 = sphi 0, %s62
      %s77 = sphi 0, %s63
      %s81 = sphi 0, %s81
      %s83 = sphi 0, %s81
      %s84 = sphi 0, %s83
      %s98 = sphi 0, %s84
      %s102 = sphi 0, %s102
      %s104 = sphi 0, %s102
      %s105 = sphi 0, %s104
      %s119 = sphi 0, %s105
      %s123 = sphi 0, %s123
      %s125 = sphi 0, %s123
      %s126 = sphi 0, %s125
      %s140 = sphi 0, %s126
      %s144 = sphi 0, %s144
      %s146 = sphi 0, %s144
      %s147 = sphi 0, %s146
      %s161 = sphi 0, %s147
      %s165 = sphi 0, %s165
      %s167 = sphi 0, %s165
      %s168 = sphi 0, %s167
      %s182 = sphi 0, %s168
      %s186 = sphi 0, %s186
      %s188 = sphi 0, %s186
      %s189 = sphi 0, %s188
      %s203 = sphi 0, %s189
      %s207 = sphi 0, %s207
      %s209 = sphi 0, %s207
      %s210 = sphi 0, %s209
      %s224 = sphi 0, %s210
      %s228 = sphi 0, %s228
      %s230 = sphi 0, %s228
      %s231 = sphi 0, %s230
      %s245 = sphi 0, %s231
      %s251 = sphi 0, %s253
      %s254 = sphi 0, %s251
      %s255 = sphi 0, %s254
      %s271 = sphi 0, %s255
      %s277 = sphi 0, %s279
      %s280 = sphi 0, %s277
      %s281 = sphi 0, %s280
      %s297 = sphi 0, %s281
      %s303 = sphi 0, %s305
      %s306 = sphi 0, %s303
      %s307 = sphi 0, %s306
      %s323 = sphi 0, %s307
    $region4: #{tpu_custom_call.1} parent=1 // loop_header_branch
      %29 = sbr.rel (%p27) target = $region8
    $region5: #{tpu_custom_call.1} parent=1 // loop_body
      %s31 = ssub.s32 %s26, 1
      %s32 = ssub.s32 %s26, 2
      %s33 = sadd.s32 %s26, 1
      %s34 = ssub.s32 %s26, %s33
      %p35 = scmp.eq.s32.totalorder %s34, 0
      %s37 = sadd.s32 %s36, 1
      %s38 = scalar_select %p35, %s36, %s37
      %p41 = pneg %p35
      %p42 = scmp.eq.s32.totalorder %s26, 1
      %p43 = por %p41, %p42
      %p44 = scmp.ne.s32.totalorder %s36, %s39
      %p45 = scmp.eq.s32.totalorder %s26, 0
      %p46 = por %p44, %p45
      %p47 = scmp.ne.s32.totalorder %s36, %s39
      %p48 = scmp.eq.s32.totalorder %s31, 1
      %p49 = por %p47, %p48
      %p50 = scmp.ne.s32.totalorder %s39, %s40
      %p51 = scmp.eq.s32.totalorder %s31, 0
      %p52 = por %p50, %p51
      %p53 = scmp.ne.s32.totalorder %s39, %s40
      %p54 = scmp.eq.s32.totalorder %s32, 1
      %p55 = por %p53, %p54
      %p57 = scmp.ne.s32.totalorder %s40, %s56
      %p58 = scmp.eq.s32.totalorder %s32, 0
      %p59 = por %p57, %p58
      %s61 = sadd.s32 %s60, 1
      %p64 = scmp.eq.s32.totalorder %s26, 1
      %p65 = scmp.ne.s32.totalorder %s60, %s62
      %p66 = scmp.eq.s32.totalorder %s26, 0
      %p67 = por %p65, %p66
      %p68 = scmp.ne.s32.totalorder %s60, %s62
      %p69 = scmp.eq.s32.totalorder %s31, 1
      %p70 = por %p68, %p69
      %p71 = scmp.ne.s32.totalorder %s62, %s63
      %p72 = scmp.eq.s32.totalorder %s31, 0
      %p73 = por %p71, %p72
      %p74 = scmp.ne.s32.totalorder %s62, %s63
      %p75 = scmp.eq.s32.totalorder %s32, 1
      %p76 = por %p74, %p75
      %p78 = scmp.ne.s32.totalorder %s63, %s77
      %p79 = scmp.eq.s32.totalorder %s32, 0
      %p80 = por %p78, %p79
      %s82 = sadd.s32 %s81, 1
      %p85 = scmp.eq.s32.totalorder %s26, 1
      %p86 = scmp.ne.s32.totalorder %s81, %s83
      %p87 = scmp.eq.s32.totalorder %s26, 0
      %p88 = por %p86, %p87
      %p89 = scmp.ne.s32.totalorder %s81, %s83
      %p90 = scmp.eq.s32.totalorder %s31, 1
      %p91 = por %p89, %p90
      %p92 = scmp.ne.s32.totalorder %s83, %s84
      %p93 = scmp.eq.s32.totalorder %s31, 0
      %p94 = por %p92, %p93
      %p95 = scmp.ne.s32.totalorder %s83, %s84
      %p96 = scmp.eq.s32.totalorder %s32, 1
      %p97 = por %p95, %p96
      %p99 = scmp.ne.s32.totalorder %s84, %s98
      %p100 = scmp.eq.s32.totalorder %s32, 0
      %p101 = por %p99, %p100
      %s103 = sadd.s32 %s102, 1
      %p106 = scmp.eq.s32.totalorder %s26, 1
      %p107 = scmp.ne.s32.totalorder %s102, %s104
      %p108 = scmp.eq.s32.totalorder %s26, 0
      %p109 = por %p107, %p108
      %p110 = scmp.ne.s32.totalorder %s102, %s104
      %p111 = scmp.eq.s32.totalorder %s31, 1
      %p112 = por %p110, %p111
      %p113 = scmp.ne.s32.totalorder %s104, %s105
      %p114 = scmp.eq.s32.totalorder %s31, 0
      %p115 = por %p113, %p114
      %p116 = scmp.ne.s32.totalorder %s104, %s105
      %p117 = scmp.eq.s32.totalorder %s32, 1
      %p118 = por %p116, %p117
      %p120 = scmp.ne.s32.totalorder %s105, %s119
      %p121 = scmp.eq.s32.totalorder %s32, 0
      %p122 = por %p120, %p121
      %s124 = sadd.s32 %s123, 1
      %p127 = scmp.eq.s32.totalorder %s26, 1
      %p128 = scmp.ne.s32.totalorder %s123, %s125
      %p129 = scmp.eq.s32.totalorder %s26, 0
      %p130 = por %p128, %p129
      %p131 = scmp.ne.s32.totalorder %s123, %s125
      %p132 = scmp.eq.s32.totalorder %s31, 1
      %p133 = por %p131, %p132
      %p134 = scmp.ne.s32.totalorder %s125, %s126
      %p135 = scmp.eq.s32.totalorder %s31, 0
      %p136 = por %p134, %p135
      %p137 = scmp.ne.s32.totalorder %s125, %s126
      %p138 = scmp.eq.s32.totalorder %s32, 1
      %p139 = por %p137, %p138
      %p141 = scmp.ne.s32.totalorder %s126, %s140
      %p142 = scmp.eq.s32.totalorder %s32, 0
      %p143 = por %p141, %p142
      %s145 = sadd.s32 %s144, 1
      %p148 = scmp.eq.s32.totalorder %s26, 1
      %p149 = scmp.ne.s32.totalorder %s144, %s146
      %p150 = scmp.eq.s32.totalorder %s26, 0
      %p151 = por %p149, %p150
      %p152 = scmp.ne.s32.totalorder %s144, %s146
      %p153 = scmp.eq.s32.totalorder %s31, 1
      %p154 = por %p152, %p153
      %p155 = scmp.ne.s32.totalorder %s146, %s147
      %p156 = scmp.eq.s32.totalorder %s31, 0
      %p157 = por %p155, %p156
      %p158 = scmp.ne.s32.totalorder %s146, %s147
      %p159 = scmp.eq.s32.totalorder %s32, 1
      %p160 = por %p158, %p159
      %p162 = scmp.ne.s32.totalorder %s147, %s161
      %p163 = scmp.eq.s32.totalorder %s32, 0
      %p164 = por %p162, %p163
      %s166 = sadd.s32 %s165, 1
      %p169 = scmp.eq.s32.totalorder %s26, 1
      %p170 = scmp.ne.s32.totalorder %s165, %s167
      %p171 = scmp.eq.s32.totalorder %s26, 0
      %p172 = por %p170, %p171
      %p173 = scmp.ne.s32.totalorder %s165, %s167
      %p174 = scmp.eq.s32.totalorder %s31, 1
      %p175 = por %p173, %p174
      %p176 = scmp.ne.s32.totalorder %s167, %s168
      %p177 = scmp.eq.s32.totalorder %s31, 0
      %p178 = por %p176, %p177
      %p179 = scmp.ne.s32.totalorder %s167, %s168
      %p180 = scmp.eq.s32.totalorder %s32, 1
      %p181 = por %p179, %p180
      %p183 = scmp.ne.s32.totalorder %s168, %s182
      %p184 = scmp.eq.s32.totalorder %s32, 0
      %p185 = por %p183, %p184
      %s187 = sadd.s32 %s186, 1
      %p190 = scmp.eq.s32.totalorder %s26, 1
      %p191 = scmp.ne.s32.totalorder %s186, %s188
      %p192 = scmp.eq.s32.totalorder %s26, 0
      %p193 = por %p191, %p192
      %p194 = scmp.ne.s32.totalorder %s186, %s188
      %p195 = scmp.eq.s32.totalorder %s31, 1
      %p196 = por %p194, %p195
      %p197 = scmp.ne.s32.totalorder %s188, %s189
      %p198 = scmp.eq.s32.totalorder %s31, 0
      %p199 = por %p197, %p198
      %p200 = scmp.ne.s32.totalorder %s188, %s189
      %p201 = scmp.eq.s32.totalorder %s32, 1
      %p202 = por %p200, %p201
      %p204 = scmp.ne.s32.totalorder %s189, %s203
      %p205 = scmp.eq.s32.totalorder %s32, 0
      %p206 = por %p204, %p205
      %s208 = sadd.s32 %s207, 1
      %p211 = scmp.eq.s32.totalorder %s26, 1
      %p212 = scmp.ne.s32.totalorder %s207, %s209
      %p213 = scmp.eq.s32.totalorder %s26, 0
      %p214 = por %p212, %p213
      %p215 = scmp.ne.s32.totalorder %s207, %s209
      %p216 = scmp.eq.s32.totalorder %s31, 1
      %p217 = por %p215, %p216
      %p218 = scmp.ne.s32.totalorder %s209, %s210
      %p219 = scmp.eq.s32.totalorder %s31, 0
      %p220 = por %p218, %p219
      %p221 = scmp.ne.s32.totalorder %s209, %s210
      %p222 = scmp.eq.s32.totalorder %s32, 1
      %p223 = por %p221, %p222
      %p225 = scmp.ne.s32.totalorder %s210, %s224
      %p226 = scmp.eq.s32.totalorder %s32, 0
      %p227 = por %p225, %p226
      %s229 = sadd.s32 %s228, 1
      %p232 = scmp.eq.s32.totalorder %s26, 1
      %p233 = scmp.ne.s32.totalorder %s228, %s230
      %p234 = scmp.eq.s32.totalorder %s26, 0
      %p235 = por %p233, %p234
      %p236 = scmp.ne.s32.totalorder %s228, %s230
      %p237 = scmp.eq.s32.totalorder %s31, 1
      %p238 = por %p236, %p237
      %p239 = scmp.ne.s32.totalorder %s230, %s231
      %p240 = scmp.eq.s32.totalorder %s31, 0
      %p241 = por %p239, %p240
      %p242 = scmp.ne.s32.totalorder %s230, %s231
      %p243 = scmp.eq.s32.totalorder %s32, 1
      %p244 = por %p242, %p243
      %p246 = scmp.ne.s32.totalorder %s231, %s245
      %p247 = scmp.eq.s32.totalorder %s32, 0
      %p248 = por %p246, %p247
      %s249 = ssub.s32 %s26, %s33
      %p250 = scmp.eq.s32.totalorder %s249, 0
      %s252 = sadd.s32 %s251, 1
      %s253 = scalar_select %p250, %s251, %s252
      %p256 = pneg %p250
      %p257 = scmp.eq.s32.totalorder %s26, 1
      %p258 = por %p256, %p257
      %p259 = scmp.ne.s32.totalorder %s251, %s254
      %p260 = scmp.eq.s32.totalorder %s26, 0
      %p261 = por %p259, %p260
      %p262 = scmp.ne.s32.totalorder %s251, %s254
      %p263 = scmp.eq.s32.totalorder %s31, 1
      %p264 = por %p262, %p263
      %p265 = scmp.ne.s32.totalorder %s254, %s255
      %p266 = scmp.eq.s32.totalorder %s31, 0
      %p267 = por %p265, %p266
      %p268 = scmp.ne.s32.totalorder %s254, %s255
      %p269 = scmp.eq.s32.totalorder %s32, 1
      %p270 = por %p268, %p269
      %p272 = scmp.ne.s32.totalorder %s255, %s271
      %p273 = scmp.eq.s32.totalorder %s32, 0
      %p274 = por %p272, %p273
      %s275 = ssub.s32 %s26, %s33
      %p276 = scmp.eq.s32.totalorder %s275, 0
      %s278 = sadd.s32 %s277, 1
      %s279 = scalar_select %p276, %s277, %s278
      %p282 = pneg %p276
      %p283 = scmp.eq.s32.totalorder %s26, 1
      %p284 = por %p282, %p283
      %p285 = scmp.ne.s32.totalorder %s277, %s280
      %p286 = scmp.eq.s32.totalorder %s26, 0
      %p287 = por %p285, %p286
      %p288 = scmp.ne.s32.totalorder %s277, %s280
      %p289 = scmp.eq.s32.totalorder %s31, 1
      %p290 = por %p288, %p289
      %p291 = scmp.ne.s32.totalorder %s280, %s281
      %p292 = scmp.eq.s32.totalorder %s31, 0
      %p293 = por %p291, %p292
      %p294 = scmp.ne.s32.totalorder %s280, %s281
      %p295 = scmp.eq.s32.totalorder %s32, 1
      %p296 = por %p294, %p295
      %p298 = scmp.ne.s32.totalorder %s281, %s297
      %p299 = scmp.eq.s32.totalorder %s32, 0
      %p300 = por %p298, %p299
      %s301 = ssub.s32 %s26, %s33
      %p302 = scmp.eq.s32.totalorder %s301, 0
      %s304 = sadd.s32 %s303, 1
      %s305 = scalar_select %p302, %s303, %s304
      %p308 = pneg %p302
      %p309 = scmp.eq.s32.totalorder %s26, 1
      %p310 = por %p308, %p309
      %p311 = scmp.ne.s32.totalorder %s303, %s306
      %p312 = scmp.eq.s32.totalorder %s26, 0
      %p313 = por %p311, %p312
      %p314 = scmp.ne.s32.totalorder %s303, %s306
      %p315 = scmp.eq.s32.totalorder %s31, 1
      %p316 = por %p314, %p315
      %p317 = scmp.ne.s32.totalorder %s306, %s307
      %p318 = scmp.eq.s32.totalorder %s31, 0
      %p319 = por %p317, %p318
      %p320 = scmp.ne.s32.totalorder %s306, %s307
      %p321 = scmp.eq.s32.totalorder %s32, 1
      %p322 = por %p320, %p321
      %p324 = scmp.ne.s32.totalorder %s307, %s323
      %p325 = scmp.eq.s32.totalorder %s32, 0
      %p326 = por %p324, %p325
      %p327 = scmp.le.s32.totalorder 1, %s26
      %p328 = scmp.lt.s32.totalorder %s26, 3
      %p329 = pnand %p327, %p328
      %p330 = pneg %p329
      // Predicated region
      $region9: #{tpu_custom_call.1} parent=5 // pred_check
        _
      $region10: #{tpu_custom_call.1} parent=5 // pred_check_branch
        %332 = sbr.rel (%p329) target = $region12
      $region11: #{tpu_custom_call.1} parent=5 // pred_region
        %s333 = ssub.s32 %s26, 1
        // Predicated region
        $region13: #{tpu_custom_call.1} parent=11 // pred_check
          %p334 = pneg %p73
        $region14: #{tpu_custom_call.1} parent=11 // pred_check_branch
          %336 = sbr.rel (%p334) target = $region16
        $region15: #{tpu_custom_call.1} parent=11 // pred_region
          _
        $region16: #{tpu_custom_call.1} parent=11 // pred_fallthru
          _
        // Predicated region
        $region17: #{tpu_custom_call.1} parent=11 // pred_check
          %p337 = pneg %p94
        $region18: #{tpu_custom_call.1} parent=11 // pred_check_branch
          %339 = sbr.rel (%p337) target = $region20
        $region19: #{tpu_custom_call.1} parent=11 // pred_region
          _
        $region20: #{tpu_custom_call.1} parent=11 // pred_fallthru
          _
        // Predicated region
        $region21: #{tpu_custom_call.1} parent=11 // pred_check
          %p340 = pneg %p115
        $region22: #{tpu_custom_call.1} parent=11 // pred_check_branch
          %342 = sbr.rel (%p340) target = $region24
        $region23: #{tpu_custom_call.1} parent=11 // pred_region
          _
        $region24: #{tpu_custom_call.1} parent=11 // pred_fallthru
          _
        // Predicated region
        $region25: #{tpu_custom_call.1} parent=11 // pred_check
          %p343 = pneg %p136
        $region26: #{tpu_custom_call.1} parent=11 // pred_check_branch
          %345 = sbr.rel (%p343) target = $region28
        $region27: #{tpu_custom_call.1} parent=11 // pred_region
          %s347 = ssub.s32 256, 256
          %348 = vsyncadd [#allocation4], %s347
          %s349 = sshll.u32 [#allocation3], 4
          %s350 = int_to_ptr.vmem [resolvable:$true] %s349
          %355 = dma.hbm_to_vmem [thread:$0]  %s4, 256, %s350, [#allocation4], 64, 64, 4
        $region28: #{tpu_custom_call.1} parent=11 // pred_fallthru
          _
        // Predicated region
        $region29: #{tpu_custom_call.1} parent=11 // pred_check
          %p356 = pneg %p157
        $region30: #{tpu_custom_call.1} parent=11 // pred_check_branch
          %358 = sbr.rel (%p356) target = $region32
        $region31: #{tpu_custom_call.1} parent=11 // pred_region
          _
        $region32: #{tpu_custom_call.1} parent=11 // pred_fallthru
          _
        // Predicated region
        $region33: #{tpu_custom_call.1} parent=11 // pred_check
          %p359 = pneg %p178
        $region34: #{tpu_custom_call.1} parent=11 // pred_check_branch
          %361 = sbr.rel (%p359) target = $region36
        $region35: #{tpu_custom_call.1} parent=11 // pred_region
          _
        $region36: #{tpu_custom_call.1} parent=11 // pred_fallthru
          _
        // Predicated region
        $region37: #{tpu_custom_call.1} parent=11 // pred_check
          %p362 = pneg %p199
        $region38: #{tpu_custom_call.1} parent=11 // pred_check_branch
          %364 = sbr.rel (%p362) target = $region40
        $region39: #{tpu_custom_call.1} parent=11 // pred_region
          _
        $region40: #{tpu_custom_call.1} parent=11 // pred_fallthru
          _
        // Predicated region
        $region41: #{tpu_custom_call.1} parent=11 // pred_check
          %p365 = pneg %p220
        $region42: #{tpu_custom_call.1} parent=11 // pred_check_branch
          %367 = sbr.rel (%p365) target = $region44
        $region43: #{tpu_custom_call.1} parent=11 // pred_region
          _
        $region44: #{tpu_custom_call.1} parent=11 // pred_fallthru
          _
        // Predicated region
        $region45: #{tpu_custom_call.1} parent=11 // pred_check
          %p368 = pneg %p241
        $region46: #{tpu_custom_call.1} parent=11 // pred_check_branch
          %370 = sbr.rel (%p368) target = $region48
        $region47: #{tpu_custom_call.1} parent=11 // pred_region
          _
        $region48: #{tpu_custom_call.1} parent=11 // pred_fallthru
          _
      $region12: #{tpu_custom_call.1} parent=5 // pred_fallthru
        _
      %p371 = scmp.lt.s32.totalorder %s26, 2
      // Predicated region
      $region49: #{tpu_custom_call.1} parent=5 // pred_check
        %p372 = pneg %p371
      $region50: #{tpu_custom_call.1} parent=5 // pred_check_branch
        %374 = sbr.rel (%p372) target = $region52
      $region51: #{tpu_custom_call.1} parent=5 // pred_region
        // Predicated region
        $region53: #{tpu_custom_call.1} parent=51 // pred_check
          %p375 = pneg %p46
        $region54: #{tpu_custom_call.1} parent=51 // pred_check_branch
          %377 = sbr.rel (%p375) target = $region56
        $region55: #{tpu_custom_call.1} parent=51 // pred_region
          %p378 = scmp.lt.s32.totalorder %s26, 1
          %s379 = scalar_select %p378, %s26, 1
          %s380 = smul.addr %s379, 8
          %s381 = scalar_lea.vmem %s0, %s380
        $region56: #{tpu_custom_call.1} parent=51 // pred_fallthru
          _
      $region52: #{tpu_custom_call.1} parent=5 // pred_fallthru
        _
      %p382 = scmp.le.s32.totalorder 1, %s26
      %p383 = scmp.lt.s32.totalorder %s26, 3
      %p384 = pnand %p382, %p383
      %p385 = pneg %p384
      // Predicated region
      $region57: #{tpu_custom_call.1} parent=5 // pred_check
        _
      $region58: #{tpu_custom_call.1} parent=5 // pred_check_branch
        %387 = sbr.rel (%p384) target = $region60
      $region59: #{tpu_custom_call.1} parent=5 // pred_region
        %s388 = ssub.s32 %s26, 1
        // Predicated region
        $region61: #{tpu_custom_call.1} parent=59 // pred_check
          %p389 = pneg %p136
        $region62: #{tpu_custom_call.1} parent=59 // pred_check_branch
          %391 = sbr.rel (%p389) target = $region64
        $region63: #{tpu_custom_call.1} parent=59 // pred_region
          %392 = dma.done [#allocation4], 256
        $region64: #{tpu_custom_call.1} parent=59 // pred_fallthru
          _
        %p393 = scmp.lt.s32.totalorder %s31, 1
        %s394 = scalar_select %p393, %s31, 1
        %s395 = smul.addr %s394, 8
        %s396 = scalar_lea.vmem %s0, %s395
        %p397 = pneg %p52
        %p398 = pneg %p49
        %p399 = pneg %p73
        %p400 = pneg %p70
        %p401 = pneg %p94
        %p402 = pneg %p91
        %p403 = pneg %p115
        %p404 = pneg %p112
        %p405 = pneg %p136
        %p406 = pneg %p133
        %p407 = pneg %p157
        %p408 = pneg %p154
        %p409 = pneg %p178
        %p410 = pneg %p175
        %p411 = pneg %p199
        %p412 = pneg %p196
        %p413 = pneg %p220
        %p414 = pneg %p217
        %p415 = pneg %p241
        %p416 = pneg %p238
        %p417 = pneg %p267
        %p418 = pneg %p264
        %s419 = sand.u32 %s254, 1
        %s420 = scalar_lea.sflag [#allocation5], %s419
        %s421 = sand.u32 %s254, 1
        %s422 = smul.addr %s421, 8
        %s423 = scalar_lea.vmem [#allocation6], %s422
        %p424 = pneg %p293
        %p425 = pneg %p290
        %s426 = sand.u32 %s31, 1
        %s427 = scalar_lea.sflag [#allocation8], %s426
        %s428 = sand.u32 %s280, 1
        %s429 = smul.addr %s428, 32
        %s430 = scalar_lea.vmem [#allocation7], %s429
        %p431 = pneg %p319
        %p432 = pneg %p316
        %s433 = sand.u32 %s31, 1
        %s434 = scalar_lea.sflag [#allocation8], %s433
        %s435 = sand.u32 %s306, 1
        %s436 = smul.addr %s435, 32
        %s437 = scalar_lea.vmem [#allocation9], %s436
        %p438 = scmp.lt.s32.totalorder %s31, 1
        %s439 = scalar_select %p438, %s31, 1
        %s440 = smul.addr %s439, 8
        %s441 = scalar_lea.vmem %s0, %s440
        %v443 = vld [vmem:[%s441] sm:$0xff]
        %v444 = vmul.f32 %v443, %v443
        %vm445 = vcmask 261120
        %v446 = vsel %vm445, %v444, 0.0
        %447 = vadd.xlane.f32.xlu0 %v446
        %v448 = vpop.xlane.xlu0 %447
        %v449 = vrcp.pop 32.0
        %v450 = vmul.f32 %v448, %v449
        %v451 = vadd.f32 %v450, 1e-06
        %v452 = vrsqrt.pop %v451
        %v453 = vmul.f32 %v443, %v452
        %v454 = vld [vmem:[%s6] sm:$0x1]
        %v456 = vlaneseq
        %v457 = vshrl.u32 %v456, 7
        %v458 = vsub.s32 0, %v457
        %v459 = vrot.slane %v454, %v458
        %v461 = vmul.f32 %v453, %v459
        %v462 = vpack.c.bf16 %v461, %v461
        %v463 = vld [vmem:[%s1] sm:$0xf]
        %v464 = vld [vmem:[%s1 + $0x4] sm:$0xf]
        %v465 = vld [vmem:[%s1 + $0x8] sm:$0xf]
        %v466 = vld [vmem:[%s1 + $0xc] sm:$0xf]
        %v471 = vunpack.c.l.b16 %v463
        %v472 = vunpack.c.l.b16 %v464
        %v473 = vunpack.c.l.b16 %v465
        %v474 = vunpack.c.l.b16 %v466
        %v475 = vpack.c.b16 %v472, %v471
        %v476 = vpack.c.b16 %v474, %v473
        %v480 = vsel %vm445, %v462, 0
        %482 = vmatprep.subr.bf16.mxu0 0
        %483 = vmatpush1.bf16.msra.mxu0 %v475
        %484 = vmatprep.subr.bf16.mxu0 0
        %485 = vmatpush1.bf16.msra.mxu0 %v476
        %486 = vmatprep.subr.bf16.mxu0 0
        %487 = vmatpush1.bf16.msra.mxu0 0
        %488 = vmatprep.subr.bf16.mxu0 0
        %489 = vmatpush1.bf16.msra.mxu0 0
        %490 = vmatprep.subr.bf16.mxu0 0
        %491 = vmatpush1.bf16.msra.mxu0 0
        %492 = vmatprep.subr.bf16.mxu0 0
        %493 = vmatpush1.bf16.msra.mxu0 0
        %494 = vmatprep.subr.bf16.mxu0 0
        %495 = vmatpush1.bf16.msra.mxu0 0
        %496 = vmatprep.subr.bf16.mxu0 0
        %497 = vmatpush1.bf16.msra.mxu0 0
        %498 = vmatprep.subr.bf16.mxu0 0
        %499 = vmatpush1.bf16.msra.mxu0 0
        %500 = vmatprep.subr.bf16.mxu0 0
        %501 = vmatpush1.bf16.msra.mxu0 0
        %502 = vmatprep.subr.bf16.mxu0 0
        %503 = vmatpush1.bf16.msra.mxu0 0
        %504 = vmatprep.subr.bf16.mxu0 0
        %505 = vmatpush1.bf16.msra.mxu0 0
        %506 = vmatprep.subr.bf16.mxu0 0
        %507 = vmatpush1.bf16.msra.mxu0 0
        %508 = vmatprep.subr.bf16.mxu0 0
        %509 = vmatpush1.bf16.msra.mxu0 0
        %510 = vmatprep.subr.bf16.mxu0 0
        %511 = vmatpush1.bf16.msra.mxu0 0
        %512 = vmatprep.subr.bf16.mxu0 0
        %513 = vmatpush1.bf16.msra.mxu0 0
        %514 = vmatprep.mubr.bf16.mxu0 0
        %515 = vmatmul.mubr.bf16.gmra.mrb[0].mxu0 %v480
        %v516 = vpop.f32.mrb[0].mxu0
        %v517 = vadd.f32 0.0, %v516
        %v518 = vpop.f32.mrb[0].mxu0
        %v519 = vpop.f32.mrb[0].mxu0
        %v520 = vpop.f32.mrb[0].mxu0
        %521 = vdwg.mxu0
        %v522 = vld [vmem:[%s8] sm:$0xff]
        %v523 = vld [vmem:[%s9] sm:$0xff]
        %v524 = vlaneseq
        %v525 = vshrl.u32 %v524, 7
        %v526 = vlaneseq
        %v527 = vand.u32 %v526, 127
        %vm528 = vcmp.le.s32.totalorder %v527, %v525
        %v529 = vsel %vm528, 0.0, -1e+09
        %v530 = vmul.f32 %v517, %v522
        %532 = vrot.lane.b32.xlu0 %v523, 4
        %v533 = vpop.permute.xlu0 %532
        %v535 = vmul.f32 %v517, %v533
        %537 = vrot.lane.b32.xlu0 %v535, 124
        %v538 = vpop.permute.xlu0 %537
        %v540 = vsub.f32 %v530, %v538
        %v541 = vmul.f32 %v540, 0.35355338
        %543 = vrot.lane.b32.xlu0 %v522, 4
        %v544 = vpop.permute.xlu0 %543
        %v546 = vmul.f32 %v517, %v544
        %v547 = vmul.f32 %v517, %v523
        %549 = vrot.lane.b32.xlu0 %v547, 4
        %v550 = vpop.permute.xlu0 %549
        %v552 = vadd.f32 %v546, %v550
        %v553 = vmul.f32 %v552, 0.35355338
        %554 = vrot.lane.b32.xlu0 %v522, 32
        %v555 = vpop.permute.xlu0 %554
        %v557 = vmul.f32 %v517, %v555
        %558 = vrot.lane.b32.xlu0 %v523, 36
        %v559 = vpop.permute.xlu0 %558
        %v561 = vmul.f32 %v517, %v559
        %563 = vrot.lane.b32.xlu0 %v561, 124
        %v564 = vpop.permute.xlu0 %563
        %v566 = vsub.f32 %v557, %v564
        %567 = vrot.lane.b32.xlu0 %v522, 36
        %v568 = vpop.permute.xlu0 %567
        %v570 = vmul.f32 %v517, %v568
        %571 = vrot.lane.b32.xlu0 %v523, 32
        %v572 = vpop.permute.xlu0 %571
        %v574 = vmul.f32 %v517, %v572
        %576 = vrot.lane.b32.xlu0 %v574, 4
        %v577 = vpop.permute.xlu0 %576
        %v579 = vadd.f32 %v570, %v577
        %581 = vrot.lane.b32.xlu0 %v566, 96
        %v582 = vpop.permute.xlu0 %581
        %vm584 = vcmask 31744
        %585 = vst.msk [vmem:[%s430] sm:$0xff] %vm584, %v582
        %587 = vrot.lane.b32.xlu0 %v579, 96
        %v588 = vpop.permute.xlu0 %587
        %vm590 = vcmask 64544
        %591 = vst.msk [vmem:[%s430] sm:$0xff] %vm590, %v588
        %593 = vrot.lane.b32.xlu0 %v517, 64
        %v594 = vpop.permute.xlu0 %593
        %vm596 = vcmask 64512
        %597 = vst.msk [vmem:[%s437] sm:$0xff] %vm596, %v594
        %v598 = vpack.c.bf16 %v541, %v541
        %v599 = vpack.c.bf16 %v566, %v566
        %v600 = vpack.c.bf16 %v553, %v553
        %v601 = vpack.c.bf16 %v579, %v579
        %603 = vrot.lane.b32.xlu0 %v600, 124
        %v604 = vpop.permute.xlu0 %603
        %606 = vrot.lane.b32.xlu0 %v601, 92
        %v607 = vpop.permute.xlu0 %606
        %v609 = vsel %vm584, %v604, 0
        %v612 = vsel %vm584, %v607, 0
        %614 = vmatprep.subr.bf16.mxu0 0
        %615 = vmatpush1.bf16.xpose.msra.mxu0 %v612
        %616 = vmatprep.subr.bf16.mxu0 0
        %617 = vmatpush1.bf16.xpose.msra.mxu0 0
        %618 = vmatprep.subr.bf16.mxu0 0
        %619 = vmatpush1.bf16.xpose.msra.mxu0 0
        %620 = vmatprep.subr.bf16.mxu0 0
        %621 = vmatpush1.bf16.xpose.msra.mxu0 0
        %622 = vmatprep.subr.bf16.mxu0 0
        %623 = vmatpush1.bf16.xpose.msra.mxu0 0
        %624 = vmatprep.subr.bf16.mxu0 0
        %625 = vmatpush1.bf16.xpose.msra.mxu0 0
        %626 = vmatprep.subr.bf16.mxu0 0
        %627 = vmatpush1.bf16.xpose.msra.mxu0 0
        %628 = vmatprep.subr.bf16.mxu0 0
        %629 = vmatpush1.bf16.xpose.msra.mxu0 0
        %630 = vmatprep.subr.bf16.mxu0 0
        %631 = vmatpush1.bf16.xpose.msra.mxu0 0
        %632 = vmatprep.subr.bf16.mxu0 0
        %633 = vmatpush1.bf16.xpose.msra.mxu0 0
        %634 = vmatprep.subr.bf16.mxu0 0
        %635 = vmatpush1.bf16.xpose.msra.mxu0 0
        %636 = vmatprep.subr.bf16.mxu0 0
        %637 = vmatpush1.bf16.xpose.msra.mxu0 0
        %638 = vmatprep.subr.bf16.mxu0 0
        %639 = vmatpush1.bf16.xpose.msra.mxu0 0
        %640 = vmatprep.subr.bf16.mxu0 0
        %641 = vmatpush1.bf16.xpose.msra.mxu0 0
        %642 = vmatprep.subr.bf16.mxu0 0
        %643 = vmatpush1.bf16.xpose.msra.mxu0 0
        %644 = vmatprep.subr.bf16.mxu0 0
        %645 = vmatpush1.bf16.xpose.msra.mxu0 0
        %646 = vmatprep.mubr.bf16.mxu0 0
        %647 = vmatmul.mubr.bf16.gmra.mrb[0].mxu0 %v609
        %v648 = vpop.f32.mrb[0].mxu0
        %v649 = vadd.f32 0.0, %v648
        %v650 = vpop.f32.mrb[0].mxu0
        %v651 = vpop.f32.mrb[0].mxu0
        %v652 = vpop.f32.mrb[0].mxu0
        %653 = vdwg.mxu0
        %655 = vrot.lane.b32.xlu0 %v599, 96
        %v656 = vpop.permute.xlu0 %655
        %v658 = vsel %vm584, %v598, 0
        %v661 = vsel %vm584, %v656, 0
        %663 = vmatprep.subr.bf16.mxu0 0
        %664 = vmatpush1.bf16.xpose.msra.mxu0 %v661
        %665 = vmatprep.subr.bf16.mxu0 0
        %666 = vmatpush1.bf16.xpose.msra.mxu0 0
        %667 = vmatprep.subr.bf16.mxu0 0
        %668 = vmatpush1.bf16.xpose.msra.mxu0 0
        %669 = vmatprep.subr.bf16.mxu0 0
        %670 = vmatpush1.bf16.xpose.msra.mxu0 0
        %671 = vmatprep.subr.bf16.mxu0 0
        %672 = vmatpush1.bf16.xpose.msra.mxu0 0
        %673 = vmatprep.subr.bf16.mxu0 0
        %674 = vmatpush1.bf16.xpose.msra.mxu0 0
        %675 = vmatprep.subr.bf16.mxu0 0
        %676 = vmatpush1.bf16.xpose.msra.mxu0 0
        %677 = vmatprep.subr.bf16.mxu0 0
        %678 = vmatpush1.bf16.xpose.msra.mxu0 0
        %679 = vmatprep.subr.bf16.mxu0 0
        %680 = vmatpush1.bf16.xpose.msra.mxu0 0
        %681 = vmatprep.subr.bf16.mxu0 0
        %682 = vmatpush1.bf16.xpose.msra.mxu0 0
        %683 = vmatprep.subr.bf16.mxu0 0
        %684 = vmatpush1.bf16.xpose.msra.mxu0 0
        %685 = vmatprep.subr.bf16.mxu0 0
        %686 = vmatpush1.bf16.xpose.msra.mxu0 0
        %687 = vmatprep.subr.bf16.mxu0 0
        %688 = vmatpush1.bf16.xpose.msra.mxu0 0
        %689 = vmatprep.subr.bf16.mxu0 0
        %690 = vmatpush1.bf16.xpose.msra.mxu0 0
        %691 = vmatprep.subr.bf16.mxu0 0
        %692 = vmatpush1.bf16.xpose.msra.mxu0 0
        %693 = vmatprep.subr.bf16.mxu0 0
        %694 = vmatpush1.bf16.xpose.msra.mxu0 0
        %695 = vmatprep.mubr.bf16.mxu0 0
        %696 = vmatmul.mubr.bf16.gmra.mrb[0].mxu0 %v658
        %v697 = vpop.f32.mrb[0].mxu0
        %v698 = vadd.f32 %v649, %v697
        %v699 = vpop.f32.mrb[0].mxu0
        %v700 = vpop.f32.mrb[0].mxu0
        %v701 = vpop.f32.mrb[0].mxu0
        %702 = vdwg.mxu0
        %v703 = vadd.f32 %v698, %v529
        %v704 = vsel %vm596, %v703, -inf
        %705 = vmax.xlane.f32.xlu0 %v704
        %v706 = vpop.xlane.xlu0 %705
        %v707 = vsub.f32 %v703, %v706
        %v708 = vmul.f32 %v707, 1.442695
        %v709 = vpow.pop %v708
        %v710 = vsel %vm596, %v709, 0.0
        %711 = vadd.xlane.f32.xlu0 %v710
        %v712 = vpop.xlane.xlu0 %711
        %v713 = vrcp.pop %v712
        %v714 = vmul.f32 %v709, %v713
        %v715 = vpack.c.bf16 %v714, %v714
        %v716 = vpack.c.bf16 %v517, %v517
        %718 = vrot.lane.b32.xlu0 %v716, 64
        %v719 = vpop.permute.xlu0 %718
        %v721 = vsel %vm596, %v715, 0
        %vm723 = vcmask 1043456
        %v725 = vsel %vm723, %v719, 0
        %727 = vmatprep.subr.bf16.mxu0 0
        %728 = vmatpush1.bf16.msra.mxu0 %v725
        %729 = vmatprep.subr.bf16.mxu0 0
        %730 = vmatpush1.bf16.msra.mxu0 0
        %731 = vmatprep.subr.bf16.mxu0 0
        %732 = vmatpush1.bf16.msra.mxu0 0
        %733 = vmatprep.subr.bf16.mxu0 0
        %734 = vmatpush1.bf16.msra.mxu0 0
        %735 = vmatprep.subr.bf16.mxu0 0
        %736 = vmatpush1.bf16.msra.mxu0 0
        %737 = vmatprep.subr.bf16.mxu0 0
        %738 = vmatpush1.bf16.msra.mxu0 0
        %739 = vmatprep.subr.bf16.mxu0 0
        %740 = vmatpush1.bf16.msra.mxu0 0
        %741 = vmatprep.subr.bf16.mxu0 0
        %742 = vmatpush1.bf16.msra.mxu0 0
        %743 = vmatprep.subr.bf16.mxu0 0
        %744 = vmatpush1.bf16.msra.mxu0 0
        %745 = vmatprep.subr.bf16.mxu0 0
        %746 = vmatpush1.bf16.msra.mxu0 0
        %747 = vmatprep.subr.bf16.mxu0 0
        %748 = vmatpush1.bf16.msra.mxu0 0
        %749 = vmatprep.subr.bf16.mxu0 0
        %750 = vmatpush1.bf16.msra.mxu0 0
        %751 = vmatprep.subr.bf16.mxu0 0
        %752 = vmatpush1.bf16.msra.mxu0 0
        %753 = vmatprep.subr.bf16.mxu0 0
        %754 = vmatpush1.bf16.msra.mxu0 0
        %755 = vmatprep.subr.bf16.mxu0 0
        %756 = vmatpush1.bf16.msra.mxu0 0
        %757 = vmatprep.subr.bf16.mxu0 0
        %758 = vmatpush1.bf16.msra.mxu0 0
        %759 = vmatprep.mubr.bf16.mxu0 0
        %760 = vmatmul.mubr.bf16.gmra.mrb[0].mxu0 %v721
        %v761 = vpop.f32.mrb[0].mxu0
        %v762 = vadd.f32 0.0, %v761
        %v763 = vpop.f32.mrb[0].mxu0
        %v764 = vpop.f32.mrb[0].mxu0
        %v765 = vpop.f32.mrb[0].mxu0
        %766 = vdwg.mxu0
        %767 = vst.msk [vmem:[#allocation2] sm:$0xff] %vm596, %v762
        %768 = vrot.lane.b32.xlu0 %v522, 8
        %v769 = vpop.permute.xlu0 %768
        %v771 = vmul.f32 %v517, %v769
        %772 = vrot.lane.b32.xlu0 %v523, 12
        %v773 = vpop.permute.xlu0 %772
        %v775 = vmul.f32 %v517, %v773
        %777 = vrot.lane.b32.xlu0 %v775, 124
        %v778 = vpop.permute.xlu0 %777
        %v780 = vsub.f32 %v771, %v778
        %v781 = vmul.f32 %v780, 0.35355338
        %782 = vrot.lane.b32.xlu0 %v522, 12
        %v783 = vpop.permute.xlu0 %782
        %v785 = vmul.f32 %v517, %v783
        %786 = vrot.lane.b32.xlu0 %v523, 8
        %v787 = vpop.permute.xlu0 %786
        %v789 = vmul.f32 %v517, %v787
        %791 = vrot.lane.b32.xlu0 %v789, 4
        %v792 = vpop.permute.xlu0 %791
        %v794 = vadd.f32 %v785, %v792
        %v795 = vmul.f32 %v794, 0.35355338
        %796 = vrot.lane.b32.xlu0 %v522, 40
        %v797 = vpop.permute.xlu0 %796
        %v799 = vmul.f32 %v517, %v797
        %800 = vrot.lane.b32.xlu0 %v523, 44
        %v801 = vpop.permute.xlu0 %800
        %v803 = vmul.f32 %v517, %v801
        %805 = vrot.lane.b32.xlu0 %v803, 124
        %v806 = vpop.permute.xlu0 %805
        %v808 = vsub.f32 %v799, %v806
        %809 = vrot.lane.b32.xlu0 %v522, 44
        %v810 = vpop.permute.xlu0 %809
        %v812 = vmul.f32 %v517, %v810
        %813 = vrot.lane.b32.xlu0 %v523, 40
        %v814 = vpop.permute.xlu0 %813
        %v816 = vmul.f32 %v517, %v814
        %818 = vrot.lane.b32.xlu0 %v816, 4
        %v819 = vpop.permute.xlu0 %818
        %v821 = vadd.f32 %v812, %v819
        %823 = vrot.lane.b32.xlu0 %v808, 88
        %v824 = vpop.permute.xlu0 %823
        %s826 = scalar_lea.vmem %s430, 8 [#allocation7]
        %827 = vst.msk [vmem:[%s826] sm:$0xff] %vm584, %v824
        %829 = vrot.lane.b32.xlu0 %v821, 88
        %v830 = vpop.permute.xlu0 %829
        %832 = vst.msk [vmem:[%s826] sm:$0xff] %vm590, %v830
        %833 = vrot.lane.b32.xlu0 %v517, 56
        %v834 = vpop.permute.xlu0 %833
        %s836 = scalar_lea.vmem %s437, 8 [#allocation9]
        %837 = vst.msk [vmem:[%s836] sm:$0xff] %vm596, %v834
        %v838 = vpack.c.bf16 %v781, %v781
        %v839 = vpack.c.bf16 %v808, %v808
        %v840 = vpack.c.bf16 %v795, %v795
        %v841 = vpack.c.bf16 %v821, %v821
        %843 = vrot.lane.b32.xlu0 %v840, 116
        %v844 = vpop.permute.xlu0 %843
        %846 = vrot.lane.b32.xlu0 %v841, 84
        %v847 = vpop.permute.xlu0 %846
        %v849 = vsel %vm584, %v844, 0
        %v852 = vsel %vm584, %v847, 0
        %854 = vmatprep.subr.bf16.mxu0 0
        %855 = vmatpush1.bf16.xpose.msra.mxu0 %v852
        %856 = vmatprep.subr.bf16.mxu0 0
        %857 = vmatpush1.bf16.xpose.msra.mxu0 0
        %858 = vmatprep.subr.bf16.mxu0 0
        %859 = vmatpush1.bf16.xpose.msra.mxu0 0
        %860 = vmatprep.subr.bf16.mxu0 0
        %861 = vmatpush1.bf16.xpose.msra.mxu0 0
        %862 = vmatprep.subr.bf16.mxu0 0
        %863 = vmatpush1.bf16.xpose.msra.mxu0 0
        %864 = vmatprep.subr.bf16.mxu0 0
        %865 = vmatpush1.bf16.xpose.msra.mxu0 0
        %866 = vmatprep.subr.bf16.mxu0 0
        %867 = vmatpush1.bf16.xpose.msra.mxu0 0
        %868 = vmatprep.subr.bf16.mxu0 0
        %869 = vmatpush1.bf16.xpose.msra.mxu0 0
        %870 = vmatprep.subr.bf16.mxu0 0
        %871 = vmatpush1.bf16.xpose.msra.mxu0 0
        %872 = vmatprep.subr.bf16.mxu0 0
        %873 = vmatpush1.bf16.xpose.msra.mxu0 0
        %874 = vmatprep.subr.bf16.mxu0 0
        %875 = vmatpush1.bf16.xpose.msra.mxu0 0
        %876 = vmatprep.subr.bf16.mxu0 0
        %877 = vmatpush1.bf16.xpose.msra.mxu0 0
        %878 = vmatprep.subr.bf16.mxu0 0
        %879 = vmatpush1.bf16.xpose.msra.mxu0 0
        %880 = vmatprep.subr.bf16.mxu0 0
        %881 = vmatpush1.bf16.xpose.msra.mxu0 0
        %882 = vmatprep.subr.bf16.mxu0 0
        %883 = vmatpush1.bf16.xpose.msra.mxu0 0
        %884 = vmatprep.subr.bf16.mxu0 0
        %885 = vmatpush1.bf16.xpose.msra.mxu0 0
        %886 = vmatprep.mubr.bf16.mxu0 0
        %887 = vmatmul.mubr.bf16.gmra.mrb[0].mxu0 %v849
        %v888 = vpop.f32.mrb[0].mxu0
        %v889 = vadd.f32 0.0, %v888
        %v890 = vpop.f32.mrb[0].mxu0
        %v891 = vpop.f32.mrb[0].mxu0
        %v892 = vpop.f32.mrb[0].mxu0
        %893 = vdwg.mxu0
        %895 = vrot.lane.b32.xlu0 %v838, 120
        %v896 = vpop.permute.xlu0 %895
        %898 = vrot.lane.b32.xlu0 %v839, 88
        %v899 = vpop.permute.xlu0 %898
        %v901 = vsel %vm584, %v896, 0
        %v904 = vsel %vm584, %v899, 0
        %906 = vmatprep.subr.bf16.mxu0 0
        %907 = vmatpush1.bf16.xpose.msra.mxu0 %v904
        %908 = vmatprep.subr.bf16.mxu0 0
        %909 = vmatpush1.bf16.xpose.msra.mxu0 0
        %910 = vmatprep.subr.bf16.mxu0 0
        %911 = vmatpush1.bf16.xpose.msra.mxu0 0
        %912 = vmatprep.subr.bf16.mxu0 0
        %913 = vmatpush1.bf16.xpose.msra.mxu0 0
        %914 = vmatprep.subr.bf16.mxu0 0
        %915 = vmatpush1.bf16.xpose.msra.mxu0 0
        %916 = vmatprep.subr.bf16.mxu0 0
        %917 = vmatpush1.bf16.xpose.msra.mxu0 0
        %918 = vmatprep.subr.bf16.mxu0 0
        %919 = vmatpush1.bf16.xpose.msra.mxu0 0
        %920 = vmatprep.subr.bf16.mxu0 0
        %921 = vmatpush1.bf16.xpose.msra.mxu0 0
        %922 = vmatprep.subr.bf16.mxu0 0
        %923 = vmatpush1.bf16.xpose.msra.mxu0 0
        %924 = vmatprep.subr.bf16.mxu0 0
        %925 = vmatpush1.bf16.xpose.msra.mxu0 0
        %926 = vmatprep.subr.bf16.mxu0 0
        %927 = vmatpush1.bf16.xpose.msra.mxu0 0
        %928 = vmatprep.subr.bf16.mxu0 0
        %929 = vmatpush1.bf16.xpose.msra.mxu0 0
        %930 = vmatprep.subr.bf16.mxu0 0
        %931 = vmatpush1.bf16.xpose.msra.mxu0 0
        %932 = vmatprep.subr.bf16.mxu0 0
        %933 = vmatpush1.bf16.xpose.msra.mxu0 0
        %934 = vmatprep.subr.bf16.mxu0 0
        %935 = vmatpush1.bf16.xpose.msra.mxu0 0
        %936 = vmatprep.subr.bf16.mxu0 0
        %937 = vmatpush1.bf16.xpose.msra.mxu0 0
        %938 = vmatprep.mubr.bf16.mxu0 0
        %939 = vmatmul.mubr.bf16.gmra.mrb[0].mxu0 %v901
        %v940 = vpop.f32.mrb[0].mxu0
        %v941 = vadd.f32 %v889, %v940
        %v942 = vpop.f32.mrb[0].mxu0
        %v943 = vpop.f32.mrb[0].mxu0
        %v944 = vpop.f32.mrb[0].mxu0
        %945 = vdwg.mxu0
        %v946 = vadd.f32 %v941, %v529
        %v947 = vsel %vm596, %v946, -inf
        %948 = vmax.xlane.f32.xlu0 %v947
        %v949 = vpop.xlane.xlu0 %948
        %v950 = vsub.f32 %v946, %v949
        %v951 = vmul.f32 %v950, 1.442695
        %v952 = vpow.pop %v951
        %v953 = vsel %vm596, %v952, 0.0
        %954 = vadd.xlane.f32.xlu0 %v953
        %v955 = vpop.xlane.xlu0 %954
        %v956 = vrcp.pop %v955
        %v957 = vmul.f32 %v952, %v956
        %v958 = vpack.c.bf16 %v957, %v957
        %959 = vrot.lane.b32.xlu0 %v716, 56
        %v960 = vpop.permute.xlu0 %959
        %v962 = vsel %vm596, %v958, 0
        %v965 = vsel %vm723, %v960, 0
        %967 = vmatprep.subr.bf16.mxu0 0
        %968 = vmatpush1.bf16.msra.mxu0 %v965
        %969 = vmatprep.subr.bf16.mxu0 0
        %970 = vmatpush1.bf16.msra.mxu0 0
        %971 = vmatprep.subr.bf16.mxu0 0
        %972 = vmatpush1.bf16.msra.mxu0 0
        %973 = vmatprep.subr.bf16.mxu0 0
        %974 = vmatpush1.bf16.msra.mxu0 0
        %975 = vmatprep.subr.bf16.mxu0 0
        %976 = vmatpush1.bf16.msra.mxu0 0
        %977 = vmatprep.subr.bf16.mxu0 0
        %978 = vmatpush1.bf16.msra.mxu0 0
        %979 = vmatprep.subr.bf16.mxu0 0
        %980 = vmatpush1.bf16.msra.mxu0 0
        %981 = vmatprep.subr.bf16.mxu0 0
        %982 = vmatpush1.bf16.msra.mxu0 0
        %983 = vmatprep.subr.bf16.mxu0 0
        %984 = vmatpush1.bf16.msra.mxu0 0
        %985 = vmatprep.subr.bf16.mxu0 0
        %986 = vmatpush1.bf16.msra.mxu0 0
        %987 = vmatprep.subr.bf16.mxu0 0
        %988 = vmatpush1.bf16.msra.mxu0 0
        %989 = vmatprep.subr.bf16.mxu0 0
        %990 = vmatpush1.bf16.msra.mxu0 0
        %991 = vmatprep.subr.bf16.mxu0 0
        %992 = vmatpush1.bf16.msra.mxu0 0
        %993 = vmatprep.subr.bf16.mxu0 0
        %994 = vmatpush1.bf16.msra.mxu0 0
        %995 = vmatprep.subr.bf16.mxu0 0
        %996 = vmatpush1.bf16.msra.mxu0 0
        %997 = vmatprep.subr.bf16.mxu0 0
        %998 = vmatpush1.bf16.msra.mxu0 0
        %999 = vmatprep.mubr.bf16.mxu0 0
        %1000 = vmatmul.mubr.bf16.gmra.mrb[0].mxu0 %v962
        %v1001 = vpop.f32.mrb[0].mxu0
        %v1002 = vadd.f32 0.0, %v1001
        %v1003 = vpop.f32.mrb[0].mxu0
        %v1004 = vpop.f32.mrb[0].mxu0
        %v1005 = vpop.f32.mrb[0].mxu0
        %1006 = vdwg.mxu0
        %1008 = vrot.lane.b32.xlu0 %v1002, 8
        %v1009 = vpop.permute.xlu0 %1008
        %vm1011 = vcmask 130112
        %1012 = vst.msk [vmem:[#allocation2] sm:$0xff] %vm1011, %v1009
        %1013 = vrot.lane.b32.xlu0 %v522, 16
        %v1014 = vpop.permute.xlu0 %1013
        %v1016 = vmul.f32 %v517, %v1014
        %1017 = vrot.lane.b32.xlu0 %v523, 20
        %v1018 = vpop.permute.xlu0 %1017
        %v1020 = vmul.f32 %v517, %v1018
        %1022 = vrot.lane.b32.xlu0 %v1020, 124
        %v1023 = vpop.permute.xlu0 %1022
        %v1025 = vsub.f32 %v1016, %v1023
        %v1026 = vmul.f32 %v1025, 0.35355338
        %1027 = vrot.lane.b32.xlu0 %v522, 20
        %v1028 = vpop.permute.xlu0 %1027
        %v1030 = vmul.f32 %v517, %v1028
        %1031 = vrot.lane.b32.xlu0 %v523, 16
        %v1032 = vpop.permute.xlu0 %1031
        %v1034 = vmul.f32 %v517, %v1032
        %1036 = vrot.lane.b32.xlu0 %v1034, 4
        %v1037 = vpop.permute.xlu0 %1036
        %v1039 = vadd.f32 %v1030, %v1037
        %v1040 = vmul.f32 %v1039, 0.35355338
        %1041 = vrot.lane.b32.xlu0 %v522, 48
        %v1042 = vpop.permute.xlu0 %1041
        %v1044 = vmul.f32 %v517, %v1042
        %1045 = vrot.lane.b32.xlu0 %v523, 52
        %v1046 = vpop.permute.xlu0 %1045
        %v1048 = vmul.f32 %v517, %v1046
        %1050 = vrot.lane.b32.xlu0 %v1048, 124
        %v1051 = vpop.permute.xlu0 %1050
        %v1053 = vsub.f32 %v1044, %v1051
        %1054 = vrot.lane.b32.xlu0 %v522, 52
        %v1055 = vpop.permute.xlu0 %1054
        %v1057 = vmul.f32 %v517, %v1055
        %1058 = vrot.lane.b32.xlu0 %v523, 48
        %v1059 = vpop.permute.xlu0 %1058
        %v1061 = vmul.f32 %v517, %v1059
        %1063 = vrot.lane.b32.xlu0 %v1061, 4
        %v1064 = vpop.permute.xlu0 %1063
        %v1066 = vadd.f32 %v1057, %v1064
        %1068 = vrot.lane.b32.xlu0 %v1053, 80
        %v1069 = vpop.permute.xlu0 %1068
        %s1071 = scalar_lea.vmem %s430, 16 [#allocation7]
        %1072 = vst.msk [vmem:[%s1071] sm:$0xff] %vm584, %v1069
        %1074 = vrot.lane.b32.xlu0 %v1066, 80
        %v1075 = vpop.permute.xlu0 %1074
        %1077 = vst.msk [vmem:[%s1071] sm:$0xff] %vm590, %v1075
        %1078 = vrot.lane.b32.xlu0 %v517, 48
        %v1079 = vpop.permute.xlu0 %1078
        %s1081 = scalar_lea.vmem %s437, 16 [#allocation9]
        %1082 = vst.msk [vmem:[%s1081] sm:$0xff] %vm596, %v1079
        %v1083 = vpack.c.bf16 %v1026, %v1026
        %v1084 = vpack.c.bf16 %v1053, %v1053
        %v1085 = vpack.c.bf16 %v1040, %v1040
        %v1086 = vpack.c.bf16 %v1066, %v1066
        %1088 = vrot.lane.b32.xlu0 %v1085, 108
        %v1089 = vpop.permute.xlu0 %1088
        %1091 = vrot.lane.b32.xlu0 %v1086, 76
        %v1092 = vpop.permute.xlu0 %1091
        %v1094 = vsel %vm584, %v1089, 0
        %v1097 = vsel %vm584, %v1092, 0
        %1099 = vmatprep.subr.bf16.mxu0 0
        %1100 = vmatpush1.bf16.xpose.msra.mxu0 %v1097
        %1101 = vmatprep.subr.bf16.mxu0 0
        %1102 = vmatpush1.bf16.xpose.msra.mxu0 0
        %1103 = vmatprep.subr.bf16.mxu0 0
        %1104 = vmatpush1.bf16.xpose.msra.mxu0 0
        %1105 = vmatprep.subr.bf16.mxu0 0
        %1106 = vmatpush1.bf16.xpose.msra.mxu0 0
        %1107 = vmatprep.subr.bf16.mxu0 0
        %1108 = vmatpush1.bf16.xpose.msra.mxu0 0
        %1109 = vmatprep.subr.bf16.mxu0 0
        %1110 = vmatpush1.bf16.xpose.msra.mxu0 0
        %1111 = vmatprep.subr.bf16.mxu0 0
        %1112 = vmatpush1.bf16.xpose.msra.mxu0 0
        %1113 = vmatprep.subr.bf16.mxu0 0
        %1114 = vmatpush1.bf16.xpose.msra.mxu0 0
        %1115 = vmatprep.subr.bf16.mxu0 0
        %1116 = vmatpush1.bf16.xpose.msra.mxu0 0
        %1117 = vmatprep.subr.bf16.mxu0 0
        %1118 = vmatpush1.bf16.xpose.msra.mxu0 0
        %1119 = vmatprep.subr.bf16.mxu0 0
        %1120 = vmatpush1.bf16.xpose.msra.mxu0 0
        %1121 = vmatprep.subr.bf16.mxu0 0
        %1122 = vmatpush1.bf16.xpose.msra.mxu0 0
        %1123 = vmatprep.subr.bf16.mxu0 0
        %1124 = vmatpush1.bf16.xpose.msra.mxu0 0
        %1125 = vmatprep.subr.bf16.mxu0 0
        %1126 = vmatpush1.bf16.xpose.msra.mxu0 0
        %1127 = vmatprep.subr.bf16.mxu0 0
        %1128 = vmatpush1.bf16.xpose.msra.mxu0 0
        %1129 = vmatprep.subr.bf16.mxu0 0
        %1130 = vmatpush1.bf16.xpose.msra.mxu0 0
        %1131 = vmatprep.mubr.bf16.mxu0 0
        %1132 = vmatmul.mubr.bf16.gmra.mrb[0].mxu0 %v1094
        %v1133 = vpop.f32.mrb[0].mxu0
        %v1134 = vadd.f32 0.0, %v1133
        %v1135 = vpop.f32.mrb[0].mxu0
        %v1136 = vpop.f32.mrb[0].mxu0
        %v1137 = vpop.f32.mrb[0].mxu0
        %1138 = vdwg.mxu0
        %1140 = vrot.lane.b32.xlu0 %v1083, 112
        %v1141 = vpop.permute.xlu0 %1140
        %1143 = vrot.lane.b32.xlu0 %v1084, 80
        %v1144 = vpop.permute.xlu0 %1143
        %v1146 = vsel %vm584, %v1141, 0
        %v1149 = vsel %vm584, %v1144, 0
        %1151 = vmatprep.subr.bf16.mxu0 0
        %1152 = vmatpush1.bf16.xpose.msra.mxu0 %v1149
        %1153 = vmatprep.subr.bf16.mxu0 0
        %1154 = vmatpush1.bf16.xpose.msra.mxu0 0
        %1155 = vmatprep.subr.bf16.mxu0 0
        %1156 = vmatpush1.bf16.xpose.msra.mxu0 0
        %1157 = vmatprep.subr.bf16.mxu0 0
        %1158 = vmatpush1.bf16.xpose.msra.mxu0 0
        %1159 = vmatprep.subr.bf16.mxu0 0
        %1160 = vmatpush1.bf16.xpose.msra.mxu0 0
        %1161 = vmatprep.subr.bf16.mxu0 0
        %1162 = vmatpush1.bf16.xpose.msra.mxu0 0
        %1163 = vmatprep.subr.bf16.mxu0 0
        %1164 = vmatpush1.bf16.xpose.msra.mxu0 0
        %1165 = vmatprep.subr.bf16.mxu0 0
        %1166 = vmatpush1.bf16.xpose.msra.mxu0 0
        %1167 = vmatprep.subr.bf16.mxu0 0
        %1168 = vmatpush1.bf16.xpose.msra.mxu0 0
        %1169 = vmatprep.subr.bf16.mxu0 0
        %1170 = vmatpush1.bf16.xpose.msra.mxu0 0
        %1171 = vmatprep.subr.bf16.mxu0 0
        %1172 = vmatpush1.bf16.xpose.msra.mxu0 0
        %1173 = vmatprep.subr.bf16.mxu0 0
        %1174 = vmatpush1.bf16.xpose.msra.mxu0 0
        %1175 = vmatprep.subr.bf16.mxu0 0
        %1176 = vmatpush1.bf16.xpose.msra.mxu0 0
        %1177 = vmatprep.subr.bf16.mxu0 0
        %1178 = vmatpush1.bf16.xpose.msra.mxu0 0
        %1179 = vmatprep.subr.bf16.mxu0 0
        %1180 = vmatpush1.bf16.xpose.msra.mxu0 0
        %1181 = vmatprep.subr.bf16.mxu0 0
        %1182 = vmatpush1.bf16.xpose.msra.mxu0 0
        %1183 = vmatprep.mubr.bf16.mxu0 0
        %1184 = vmatmul.mubr.bf16.gmra.mrb[0].mxu0 %v1146
        %v1185 = vpop.f32.mrb[0].mxu0
        %v1186 = vadd.f32 %v1134, %v1185
        %v1187 = vpop.f32.mrb[0].mxu0
        %v1188 = vpop.f32.mrb[0].mxu0
        %v1189 = vpop.f32.mrb[0].mxu0
        %1190 = vdwg.mxu0
        %v1191 = vadd.f32 %v1186, %v529
        %v1192 = vsel %vm596, %v1191, -inf
        %1193 = vmax.xlane.f32.xlu0 %v1192
        %v1194 = vpop.xlane.xlu0 %1193
        %v1195 = vsub.f32 %v1191, %v1194
        %v1196 = vmul.f32 %v1195, 1.442695
        %v1197 = vpow.pop %v1196
        %v1198 = vsel %vm596, %v1197, 0.0
        %1199 = vadd.xlane.f32.xlu0 %v1198
        %v1200 = vpop.xlane.xlu0 %1199
        %v1201 = vrcp.pop %v1200
        %v1202 = vmul.f32 %v1197, %v1201
        %v1203 = vpack.c.bf16 %v1202, %v1202
        %1204 = vrot.lane.b32.xlu0 %v716, 48
        %v1205 = vpop.permute.xlu0 %1204
        %v1207 = vsel %vm596, %v1203, 0
        %v1210 = vsel %vm723, %v1205, 0
        %1212 = vmatprep.subr.bf16.mxu0 0
        %1213 = vmatpush1.bf16.msra.mxu0 %v1210
        %1214 = vmatprep.subr.bf16.mxu0 0
        %1215 = vmatpush1.bf16.msra.mxu0 0
        %1216 = vmatprep.subr.bf16.mxu0 0
        %1217 = vmatpush1.bf16.msra.mxu0 0
        %1218 = vmatprep.subr.bf16.mxu0 0
        %1219 = vmatpush1.bf16.msra.mxu0 0
        %1220 = vmatprep.subr.bf16.mxu0 0
        %1221 = vmatpush1.bf16.msra.mxu0 0
        %1222 = vmatprep.subr.bf16.mxu0 0
        %1223 = vmatpush1.bf16.msra.mxu0 0
        %1224 = vmatprep.subr.bf16.mxu0 0
        %1225 = vmatpush1.bf16.msra.mxu0 0
        %1226 = vmatprep.subr.bf16.mxu0 0
        %1227 = vmatpush1.bf16.msra.mxu0 0
        %1228 = vmatprep.subr.bf16.mxu0 0
        %1229 = vmatpush1.bf16.msra.mxu0 0
        %1230 = vmatprep.subr.bf16.mxu0 0
        %1231 = vmatpush1.bf16.msra.mxu0 0
        %1232 = vmatprep.subr.bf16.mxu0 0
        %1233 = vmatpush1.bf16.msra.mxu0 0
        %1234 = vmatprep.subr.bf16.mxu0 0
        %1235 = vmatpush1.bf16.msra.mxu0 0
        %1236 = vmatprep.subr.bf16.mxu0 0
        %1237 = vmatpush1.bf16.msra.mxu0 0
        %1238 = vmatprep.subr.bf16.mxu0 0
        %1239 = vmatpush1.bf16.msra.mxu0 0
        %1240 = vmatprep.subr.bf16.mxu0 0
        %1241 = vmatpush1.bf16.msra.mxu0 0
        %1242 = vmatprep.subr.bf16.mxu0 0
        %1243 = vmatpush1.bf16.msra.mxu0 0
        %1244 = vmatprep.mubr.bf16.mxu0 0
        %1245 = vmatmul.mubr.bf16.gmra.mrb[0].mxu0 %v1207
        %v1246 = vpop.f32.mrb[0].mxu0
        %v1247 = vadd.f32 0.0, %v1246
        %v1248 = vpop.f32.mrb[0].mxu0
        %v1249 = vpop.f32.mrb[0].mxu0
        %v1250 = vpop.f32.mrb[0].mxu0
        %1251 = vdwg.mxu0
        %1253 = vrot.lane.b32.xlu0 %v1247, 16
        %v1254 = vpop.permute.xlu0 %1253
        %vm1256 = vcmask 195712
        %1257 = vst.msk [vmem:[#allocation2] sm:$0xff] %vm1256, %v1254
        %1258 = vrot.lane.b32.xlu0 %v522, 24
        %v1259 = vpop.permute.xlu0 %1258
        %v1261 = vmul.f32 %v517, %v1259
        %1262 = vrot.lane.b32.xlu0 %v523, 28
        %v1263 = vpop.permute.xlu0 %1262
        %v1265 = vmul.f32 %v517, %v1263
        %1267 = vrot.lane.b32.xlu0 %v1265, 124
        %v1268 = vpop.permute.xlu0 %1267
        %v1270 = vsub.f32 %v1261, %v1268
        %v1271 = vmul.f32 %v1270, 0.35355338
        %1272 = vrot.lane.b32.xlu0 %v522, 28
        %v1273 = vpop.permute.xlu0 %1272
        %v1275 = vmul.f32 %v517, %v1273
        %1276 = vrot.lane.b32.xlu0 %v523, 24
        %v1277 = vpop.permute.xlu0 %1276
        %v1279 = vmul.f32 %v517, %v1277
        %1281 = vrot.lane.b32.xlu0 %v1279, 4
        %v1282 = vpop.permute.xlu0 %1281
        %v1284 = vadd.f32 %v1275, %v1282
        %v1285 = vmul.f32 %v1284, 0.35355338
        %1286 = vrot.lane.b32.xlu0 %v522, 56
        %v1287 = vpop.permute.xlu0 %1286
        %v1289 = vmul.f32 %v517, %v1287
        %1290 = vrot.lane.b32.xlu0 %v523, 60
        %v1291 = vpop.permute.xlu0 %1290
        %v1293 = vmul.f32 %v517, %v1291
        %1295 = vrot.lane.b32.xlu0 %v1293, 124
        %v1296 = vpop.permute.xlu0 %1295
        %v1298 = vsub.f32 %v1289, %v1296
        %1299 = vrot.lane.b32.xlu0 %v522, 60
        %v1300 = vpop.permute.xlu0 %1299
        %v1302 = vmul.f32 %v517, %v1300
        %1303 = vrot.lane.b32.xlu0 %v523, 56
        %v1304 = vpop.permute.xlu0 %1303
        %v1306 = vmul.f32 %v517, %v1304
        %1308 = vrot.lane.b32.xlu0 %v1306, 4
        %v1309 = vpop.permute.xlu0 %1308
        %v1311 = vadd.f32 %v1302, %v1309
        %1313 = vrot.lane.b32.xlu0 %v1298, 72
        %v1314 = vpop.permute.xlu0 %1313
        %s1316 = scalar_lea.vmem %s430, 24 [#allocation7]
        %1317 = vst.msk [vmem:[%s1316] sm:$0xff] %vm584, %v1314
        %1319 = vrot.lane.b32.xlu0 %v1311, 72
        %v1320 = vpop.permute.xlu0 %1319
        %1322 = vst.msk [vmem:[%s1316] sm:$0xff] %vm590, %v1320
        %1323 = vrot.lane.b32.xlu0 %v517, 40
        %v1324 = vpop.permute.xlu0 %1323
        %s1326 = scalar_lea.vmem %s437, 24 [#allocation9]
        %1327 = vst.msk [vmem:[%s1326] sm:$0xff] %vm596, %v1324
        %v1328 = vpack.c.bf16 %v1271, %v1271
        %v1329 = vpack.c.bf16 %v1298, %v1298
        %v1330 = vpack.c.bf16 %v1285, %v1285
        %v1331 = vpack.c.bf16 %v1311, %v1311
        %1333 = vrot.lane.b32.xlu0 %v1330, 100
        %v1334 = vpop.permute.xlu0 %1333
        %1336 = vrot.lane.b32.xlu0 %v1331, 68
        %v1337 = vpop.permute.xlu0 %1336
        %v1339 = vsel %vm584, %v1334, 0
        %v1342 = vsel %vm584, %v1337, 0
        %1344 = vmatprep.subr.bf16.mxu0 0
        %1345 = vmatpush1.bf16.xpose.msra.mxu0 %v1342
        %1346 = vmatprep.subr.bf16.mxu0 0
        %1347 = vmatpush1.bf16.xpose.msra.mxu0 0
        %1348 = vmatprep.subr.bf16.mxu0 0
        %1349 = vmatpush1.bf16.xpose.msra.mxu0 0
        %1350 = vmatprep.subr.bf16.mxu0 0
        %1351 = vmatpush1.bf16.xpose.msra.mxu0 0
        %1352 = vmatprep.subr.bf16.mxu0 0
        %1353 = vmatpush1.bf16.xpose.msra.mxu0 0
        %1354 = vmatprep.subr.bf16.mxu0 0
        %1355 = vmatpush1.bf16.xpose.msra.mxu0 0
        %1356 = vmatprep.subr.bf16.mxu0 0
        %1357 = vmatpush1.bf16.xpose.msra.mxu0 0
        %1358 = vmatprep.subr.bf16.mxu0 0
        %1359 = vmatpush1.bf16.xpose.msra.mxu0 0
        %1360 = vmatprep.subr.bf16.mxu0 0
        %1361 = vmatpush1.bf16.xpose.msra.mxu0 0
        %1362 = vmatprep.subr.bf16.mxu0 0
        %1363 = vmatpush1.bf16.xpose.msra.mxu0 0
        %1364 = vmatprep.subr.bf16.mxu0 0
        %1365 = vmatpush1.bf16.xpose.msra.mxu0 0
        %1366 = vmatprep.subr.bf16.mxu0 0
        %1367 = vmatpush1.bf16.xpose.msra.mxu0 0
        %1368 = vmatprep.subr.bf16.mxu0 0
        %1369 = vmatpush1.bf16.xpose.msra.mxu0 0
        %1370 = vmatprep.subr.bf16.mxu0 0
        %1371 = vmatpush1.bf16.xpose.msra.mxu0 0
        %1372 = vmatprep.subr.bf16.mxu0 0
        %1373 = vmatpush1.bf16.xpose.msra.mxu0 0
        %1374 = vmatprep.subr.bf16.mxu0 0
        %1375 = vmatpush1.bf16.xpose.msra.mxu0 0
        %1376 = vmatprep.mubr.bf16.mxu0 0
        %1377 = vmatmul.mubr.bf16.gmra.mrb[0].mxu0 %v1339
        %v1378 = vpop.f32.mrb[0].mxu0
        %v1379 = vadd.f32 0.0, %v1378
        %v1380 = vpop.f32.mrb[0].mxu0
        %v1381 = vpop.f32.mrb[0].mxu0
        %v1382 = vpop.f32.mrb[0].mxu0
        %1383 = vdwg.mxu0
        %1385 = vrot.lane.b32.xlu0 %v1328, 104
        %v1386 = vpop.permute.xlu0 %1385
        %1388 = vrot.lane.b32.xlu0 %v1329, 72
        %v1389 = vpop.permute.xlu0 %1388
        %v1391 = vsel %vm584, %v1386, 0
        %v1394 = vsel %vm584, %v1389, 0
        %1396 = vmatprep.subr.bf16.mxu0 0
        %1397 = vmatpush1.bf16.xpose.msra.mxu0 %v1394
        %1398 = vmatprep.subr.bf16.mxu0 0
        %1399 = vmatpush1.bf16.xpose.msra.mxu0 0
        %1400 = vmatprep.subr.bf16.mxu0 0
        %1401 = vmatpush1.bf16.xpose.msra.mxu0 0
        %1402 = vmatprep.subr.bf16.mxu0 0
        %1403 = vmatpush1.bf16.xpose.msra.mxu0 0
        %1404 = vmatprep.subr.bf16.mxu0 0
        %1405 = vmatpush1.bf16.xpose.msra.mxu0 0
        %1406 = vmatprep.subr.bf16.mxu0 0
        %1407 = vmatpush1.bf16.xpose.msra.mxu0 0
        %1408 = vmatprep.subr.bf16.mxu0 0
        %1409 = vmatpush1.bf16.xpose.msra.mxu0 0
        %1410 = vmatprep.subr.bf16.mxu0 0
        %1411 = vmatpush1.bf16.xpose.msra.mxu0 0
        %1412 = vmatprep.subr.bf16.mxu0 0
        %1413 = vmatpush1.bf16.xpose.msra.mxu0 0
        %1414 = vmatprep.subr.bf16.mxu0 0
        %1415 = vmatpush1.bf16.xpose.msra.mxu0 0
        %1416 = vmatprep.subr.bf16.mxu0 0
        %1417 = vmatpush1.bf16.xpose.msra.mxu0 0
        %1418 = vmatprep.subr.bf16.mxu0 0
        %1419 = vmatpush1.bf16.xpose.msra.mxu0 0
        %1420 = vmatprep.subr.bf16.mxu0 0
        %1421 = vmatpush1.bf16.xpose.msra.mxu0 0
        %1422 = vmatprep.subr.bf16.mxu0 0
        %1423 = vmatpush1.bf16.xpose.msra.mxu0 0
        %1424 = vmatprep.subr.bf16.mxu0 0
        %1425 = vmatpush1.bf16.xpose.msra.mxu0 0
        %1426 = vmatprep.subr.bf16.mxu0 0
        %1427 = vmatpush1.bf16.xpose.msra.mxu0 0
        %1428 = vmatprep.mubr.bf16.mxu0 0
        %1429 = vmatmul.mubr.bf16.gmra.mrb[0].mxu0 %v1391
        %v1430 = vpop.f32.mrb[0].mxu0
        %v1431 = vadd.f32 %v1379, %v1430
        %v1432 = vpop.f32.mrb[0].mxu0
        %v1433 = vpop.f32.mrb[0].mxu0
        %v1434 = vpop.f32.mrb[0].mxu0
        %1435 = vdwg.mxu0
        %v1436 = vadd.f32 %v1431, %v529
        %v1437 = vsel %vm596, %v1436, -inf
        %1438 = vmax.xlane.f32.xlu0 %v1437
        %v1439 = vpop.xlane.xlu0 %1438
        %v1440 = vsub.f32 %v1436, %v1439
        %v1441 = vmul.f32 %v1440, 1.442695
        %v1442 = vpow.pop %v1441
        %v1443 = vsel %vm596, %v1442, 0.0
        %1444 = vadd.xlane.f32.xlu0 %v1443
        %v1445 = vpop.xlane.xlu0 %1444
        %v1446 = vrcp.pop %v1445
        %v1447 = vmul.f32 %v1442, %v1446
        %v1448 = vpack.c.bf16 %v1447, %v1447
        %1449 = vrot.lane.b32.xlu0 %v716, 40
        %v1450 = vpop.permute.xlu0 %1449
        %v1452 = vsel %vm596, %v1448, 0
        %v1455 = vsel %vm723, %v1450, 0
        %1457 = vmatprep.subr.bf16.mxu0 0
        %1458 = vmatpush1.bf16.msra.mxu0 %v1455
        %1459 = vmatprep.subr.bf16.mxu0 0
        %1460 = vmatpush1.bf16.msra.mxu0 0
        %1461 = vmatprep.subr.bf16.mxu0 0
        %1462 = vmatpush1.bf16.msra.mxu0 0
        %1463 = vmatprep.subr.bf16.mxu0 0
        %1464 = vmatpush1.bf16.msra.mxu0 0
        %1465 = vmatprep.subr.bf16.mxu0 0
        %1466 = vmatpush1.bf16.msra.mxu0 0
        %1467 = vmatprep.subr.bf16.mxu0 0
        %1468 = vmatpush1.bf16.msra.mxu0 0
        %1469 = vmatprep.subr.bf16.mxu0 0
        %1470 = vmatpush1.bf16.msra.mxu0 0
        %1471 = vmatprep.subr.bf16.mxu0 0
        %1472 = vmatpush1.bf16.msra.mxu0 0
        %1473 = vmatprep.subr.bf16.mxu0 0
        %1474 = vmatpush1.bf16.msra.mxu0 0
        %1475 = vmatprep.subr.bf16.mxu0 0
        %1476 = vmatpush1.bf16.msra.mxu0 0
        %1477 = vmatprep.subr.bf16.mxu0 0
        %1478 = vmatpush1.bf16.msra.mxu0 0
        %1479 = vmatprep.subr.bf16.mxu0 0
        %1480 = vmatpush1.bf16.msra.mxu0 0
        %1481 = vmatprep.subr.bf16.mxu0 0
        %1482 = vmatpush1.bf16.msra.mxu0 0
        %1483 = vmatprep.subr.bf16.mxu0 0
        %1484 = vmatpush1.bf16.msra.mxu0 0
        %1485 = vmatprep.subr.bf16.mxu0 0
        %1486 = vmatpush1.bf16.msra.mxu0 0
        %1487 = vmatprep.subr.bf16.mxu0 0
        %1488 = vmatpush1.bf16.msra.mxu0 0
        %1489 = vmatprep.mubr.bf16.mxu0 0
        %1490 = vmatmul.mubr.bf16.gmra.mrb[0].mxu0 %v1452
        %v1491 = vpop.f32.mrb[0].mxu0
        %v1492 = vadd.f32 0.0, %v1491
        %v1493 = vpop.f32.mrb[0].mxu0
        %v1494 = vpop.f32.mrb[0].mxu0
        %v1495 = vpop.f32.mrb[0].mxu0
        %1496 = vdwg.mxu0
        %1498 = vrot.lane.b32.xlu0 %v1492, 24
        %v1499 = vpop.permute.xlu0 %1498
        %vm1501 = vcmask 261312
        %1502 = vst.msk [vmem:[#allocation2] sm:$0xff] %vm1501, %v1499
        %v1503 = vld [vmem:[#allocation2] sm:$0xff]
        %v1504 = vpack.c.bf16 %v1503, %v1503
        %v1505 = vld [vmem:[%s2] sm:$0xf]
        %v1506 = vld [vmem:[%s2 + $0x4] sm:$0xf]
        %v1507 = vld [vmem:[%s2 + $0x8] sm:$0xf]
        %v1508 = vld [vmem:[%s2 + $0xc] sm:$0xf]
        %v1513 = vunpack.c.l.b16 %v1505
        %v1514 = vunpack.c.l.b16 %v1506
        %v1515 = vunpack.c.l.b16 %v1507
        %v1516 = vunpack.c.l.b16 %v1508
        %v1517 = vpack.c.b16 %v1514, %v1513
        %v1518 = vpack.c.b16 %v1516, %v1515
        %v1522 = vsel %vm445, %v1504, 0
        %1524 = vmatprep.subr.bf16.mxu0 0
        %1525 = vmatpush1.bf16.msra.mxu0 %v1517
        %1526 = vmatprep.subr.bf16.mxu0 0
        %1527 = vmatpush1.bf16.msra.mxu0 %v1518
        %1528 = vmatprep.subr.bf16.mxu0 0
        %1529 = vmatpush1.bf16.msra.mxu0 0
        %1530 = vmatprep.subr.bf16.mxu0 0
        %1531 = vmatpush1.bf16.msra.mxu0 0
        %1532 = vmatprep.subr.bf16.mxu0 0
        %1533 = vmatpush1.bf16.msra.mxu0 0
        %1534 = vmatprep.subr.bf16.mxu0 0
        %1535 = vmatpush1.bf16.msra.mxu0 0
        %1536 = vmatprep.subr.bf16.mxu0 0
        %1537 = vmatpush1.bf16.msra.mxu0 0
        %1538 = vmatprep.subr.bf16.mxu0 0
        %1539 = vmatpush1.bf16.msra.mxu0 0
        %1540 = vmatprep.subr.bf16.mxu0 0
        %1541 = vmatpush1.bf16.msra.mxu0 0
        %1542 = vmatprep.subr.bf16.mxu0 0
        %1543 = vmatpush1.bf16.msra.mxu0 0
        %1544 = vmatprep.subr.bf16.mxu0 0
        %1545 = vmatpush1.bf16.msra.mxu0 0
        %1546 = vmatprep.subr.bf16.mxu0 0
        %1547 = vmatpush1.bf16.msra.mxu0 0
        %1548 = vmatprep.subr.bf16.mxu0 0
        %1549 = vmatpush1.bf16.msra.mxu0 0
        %1550 = vmatprep.subr.bf16.mxu0 0
        %1551 = vmatpush1.bf16.msra.mxu0 0
        %1552 = vmatprep.subr.bf16.mxu0 0
        %1553 = vmatpush1.bf16.msra.mxu0 0
        %1554 = vmatprep.subr.bf16.mxu0 0
        %1555 = vmatpush1.bf16.msra.mxu0 0
        %1556 = vmatprep.mubr.bf16.mxu0 0
        %1557 = vmatmul.mubr.bf16.gmra.mrb[0].mxu0 %v1522
        %v1558 = vpop.f32.mrb[0].mxu0
        %v1559 = vadd.f32 0.0, %v1558
        %v1560 = vpop.f32.mrb[0].mxu0
        %v1561 = vpop.f32.mrb[0].mxu0
        %v1562 = vpop.f32.mrb[0].mxu0
        %1563 = vdwg.mxu0
        %v1564 = vadd.f32 %v443, %v1559
        %v1565 = vmul.f32 %v1564, %v1564
        %v1566 = vsel %vm445, %v1565, 0.0
        %1567 = vadd.xlane.f32.xlu0 %v1566
        %v1568 = vpop.xlane.xlu0 %1567
        %v1569 = vmul.f32 %v1568, %v449
        %v1570 = vadd.f32 %v1569, 1e-06
        %v1571 = vrsqrt.pop %v1570
        %v1572 = vmul.f32 %v1564, %v1571
        %v1573 = vld [vmem:[%s7] sm:$0x1]
        %v1575 = vlaneseq
        %v1576 = vshrl.u32 %v1575, 7
        %v1577 = vsub.s32 0, %v1576
        %v1578 = vrot.slane %v1573, %v1577
        %v1580 = vmul.f32 %v1572, %v1578
        %v1581 = vpack.c.bf16 %v1580, %v1580
        %v1582 = vld [vmem:[%s3] sm:$0xf]
        %v1583 = vld [vmem:[%s3 + $0x4] sm:$0xf]
        %v1584 = vld [vmem:[%s3 + $0x8] sm:$0xf]
        %v1585 = vld [vmem:[%s3 + $0xc] sm:$0xf]
        %v1590 = vunpack.c.l.b16 %v1582
        %v1591 = vunpack.c.l.b16 %v1583
        %v1592 = vunpack.c.l.b16 %v1584
        %v1593 = vunpack.c.l.b16 %v1585
        %v1594 = vpack.c.b16 %v1591, %v1590
        %v1595 = vpack.c.b16 %v1593, %v1592
        %v1599 = vsel %vm445, %v1581, 0
        %1601 = vmatprep.subr.bf16.mxu0 0
        %1602 = vmatpush1.bf16.msra.mxu0 %v1594
        %1603 = vmatprep.subr.bf16.mxu0 0
        %1604 = vmatpush1.bf16.msra.mxu0 %v1595
        %1605 = vmatprep.subr.bf16.mxu0 0
        %1606 = vmatpush1.bf16.msra.mxu0 0
        %1607 = vmatprep.subr.bf16.mxu0 0
        %1608 = vmatpush1.bf16.msra.mxu0 0
        %1609 = vmatprep.subr.bf16.mxu0 0
        %1610 = vmatpush1.bf16.msra.mxu0 0
        %1611 = vmatprep.subr.bf16.mxu0 0
        %1612 = vmatpush1.bf16.msra.mxu0 0
        %1613 = vmatprep.subr.bf16.mxu0 0
        %1614 = vmatpush1.bf16.msra.mxu0 0
        %1615 = vmatprep.subr.bf16.mxu0 0
        %1616 = vmatpush1.bf16.msra.mxu0 0
        %1617 = vmatprep.subr.bf16.mxu0 0
        %1618 = vmatpush1.bf16.msra.mxu0 0
        %1619 = vmatprep.subr.bf16.mxu0 0
        %1620 = vmatpush1.bf16.msra.mxu0 0
        %1621 = vmatprep.subr.bf16.mxu0 0
        %1622 = vmatpush1.bf16.msra.mxu0 0
        %1623 = vmatprep.subr.bf16.mxu0 0
        %1624 = vmatpush1.bf16.msra.mxu0 0
        %1625 = vmatprep.subr.bf16.mxu0 0
        %1626 = vmatpush1.bf16.msra.mxu0 0
        %1627 = vmatprep.subr.bf16.mxu0 0
        %1628 = vmatpush1.bf16.msra.mxu0 0
        %1629 = vmatprep.subr.bf16.mxu0 0
        %1630 = vmatpush1.bf16.msra.mxu0 0
        %1631 = vmatprep.subr.bf16.mxu0 0
        %1632 = vmatpush1.bf16.msra.mxu0 0
        %1633 = vmatprep.mubr.bf16.mxu0 0
        %1634 = vmatmul.mubr.bf16.gmra.mrb[0].mxu0 %v1599
        %v1635 = vpop.f32.mrb[0].mxu0
        %v1636 = vadd.f32 0.0, %v1635
        %v1637 = vpop.f32.mrb[0].mxu0
        %v1638 = vpop.f32.mrb[0].mxu0
        %v1639 = vpop.f32.mrb[0].mxu0
        %1640 = vdwg.mxu0
        %v1641 = vld [vmem:[#allocation3] sm:$0xf]
        %v1642 = vld [vmem:[#allocation3 + $0x4] sm:$0xf]
        %v1643 = vld [vmem:[#allocation3 + $0x8] sm:$0xf]
        %v1644 = vld [vmem:[#allocation3 + $0xc] sm:$0xf]
        %v1649 = vunpack.c.l.b16 %v1641
        %v1650 = vunpack.c.l.b16 %v1642
        %v1651 = vunpack.c.l.b16 %v1643
        %v1652 = vunpack.c.l.b16 %v1644
        %v1653 = vpack.c.b16 %v1650, %v1649
        %v1654 = vpack.c.b16 %v1652, %v1651
        %1657 = vmatprep.subr.bf16.mxu0 0
        %1658 = vmatpush1.bf16.msra.mxu0 %v1653
        %1659 = vmatprep.subr.bf16.mxu0 0
        %1660 = vmatpush1.bf16.msra.mxu0 %v1654
        %1661 = vmatprep.subr.bf16.mxu0 0
        %1662 = vmatpush1.bf16.msra.mxu0 0
        %1663 = vmatprep.subr.bf16.mxu0 0
        %1664 = vmatpush1.bf16.msra.mxu0 0
        %1665 = vmatprep.subr.bf16.mxu0 0
        %1666 = vmatpush1.bf16.msra.mxu0 0
        %1667 = vmatprep.subr.bf16.mxu0 0
        %1668 = vmatpush1.bf16.msra.mxu0 0
        %1669 = vmatprep.subr.bf16.mxu0 0
        %1670 = vmatpush1.bf16.msra.mxu0 0
        %1671 = vmatprep.subr.bf16.mxu0 0
        %1672 = vmatpush1.bf16.msra.mxu0 0
        %1673 = vmatprep.subr.bf16.mxu0 0
        %1674 = vmatpush1.bf16.msra.mxu0 0
        %1675 = vmatprep.subr.bf16.mxu0 0
        %1676 = vmatpush1.bf16.msra.mxu0 0
        %1677 = vmatprep.subr.bf16.mxu0 0
        %1678 = vmatpush1.bf16.msra.mxu0 0
        %1679 = vmatprep.subr.bf16.mxu0 0
        %1680 = vmatpush1.bf16.msra.mxu0 0
        %1681 = vmatprep.subr.bf16.mxu0 0
        %1682 = vmatpush1.bf16.msra.mxu0 0
        %1683 = vmatprep.subr.bf16.mxu0 0
        %1684 = vmatpush1.bf16.msra.mxu0 0
        %1685 = vmatprep.subr.bf16.mxu0 0
        %1686 = vmatpush1.bf16.msra.mxu0 0
        %1687 = vmatprep.subr.bf16.mxu0 0
        %1688 = vmatpush1.bf16.msra.mxu0 0
        %1689 = vmatprep.mubr.bf16.mxu0 0
        %1690 = vmatmul.mubr.bf16.gmra.mrb[0].mxu0 %v1599
        %v1691 = vpop.f32.mrb[0].mxu0
        %v1692 = vadd.f32 0.0, %v1691
        %v1693 = vpop.f32.mrb[0].mxu0
        %v1694 = vpop.f32.mrb[0].mxu0
        %v1695 = vpop.f32.mrb[0].mxu0
        %1696 = vdwg.mxu0
        %v1697 = vxor.u32 %v1636, 2147483648
        %v1698 = vmul.f32 %v1697, 1.442695
        %v1699 = vpow.pop %v1698
        %v1700 = vadd.f32 %v1699, 1.0
        %v1701 = vrcp.pop %v1700
        %v1702 = vmul.f32 1.0, %v1701
        %v1703 = vmul.f32 %v1636, %v1702
        %v1704 = vmul.f32 %v1703, %v1692
        %v1705 = vpack.c.bf16 %v1704, %v1704
        %v1706 = vld [vmem:[%s5] sm:$0xf]
        %v1707 = vld [vmem:[%s5 + $0x4] sm:$0xf]
        %v1708 = vld [vmem:[%s5 + $0x8] sm:$0xf]
        %v1709 = vld [vmem:[%s5 + $0xc] sm:$0xf]
        %v1710 = vld [vmem:[%s5 + $0x10] sm:$0xf]
        %v1711 = vld [vmem:[%s5 + $0x14] sm:$0xf]
        %v1712 = vld [vmem:[%s5 + $0x18] sm:$0xf]
        %v1713 = vld [vmem:[%s5 + $0x1c] sm:$0xf]
        %v1722 = vunpack.c.l.b16 %v1706
        %v1723 = vunpack.c.l.b16 %v1707
        %v1724 = vunpack.c.l.b16 %v1708
        %v1725 = vunpack.c.l.b16 %v1709
        %v1726 = vunpack.c.l.b16 %v1710
        %v1727 = vunpack.c.l.b16 %v1711
        %v1728 = vunpack.c.l.b16 %v1712
        %v1729 = vunpack.c.l.b16 %v1713
        %v1730 = vpack.c.b16 %v1723, %v1722
        %v1731 = vpack.c.b16 %v1725, %v1724
        %v1732 = vpack.c.b16 %v1727, %v1726
        %v1733 = vpack.c.b16 %v1729, %v1728
        %vm1738 = vcmask 523264
        %v1740 = vsel %vm1738, %v1705, 0
        %1742 = vmatprep.subr.bf16.mxu0 0
        %1743 = vmatpush1.bf16.msra.mxu0 %v1730
        %1744 = vmatprep.subr.bf16.mxu0 0
        %1745 = vmatpush1.bf16.msra.mxu0 %v1731
        %1746 = vmatprep.subr.bf16.mxu0 0
        %1747 = vmatpush1.bf16.msra.mxu0 %v1732
        %1748 = vmatprep.subr.bf16.mxu0 0
        %1749 = vmatpush1.bf16.msra.mxu0 %v1733
        %1750 = vmatprep.subr.bf16.mxu0 0
        %1751 = vmatpush1.bf16.msra.mxu0 0
        %1752 = vmatprep.subr.bf16.mxu0 0
        %1753 = vmatpush1.bf16.msra.mxu0 0
        %1754 = vmatprep.subr.bf16.mxu0 0
        %1755 = vmatpush1.bf16.msra.mxu0 0
        %1756 = vmatprep.subr.bf16.mxu0 0
        %1757 = vmatpush1.bf16.msra.mxu0 0
        %1758 = vmatprep.subr.bf16.mxu0 0
        %1759 = vmatpush1.bf16.msra.mxu0 0
        %1760 = vmatprep.subr.bf16.mxu0 0
        %1761 = vmatpush1.bf16.msra.mxu0 0
        %1762 = vmatprep.subr.bf16.mxu0 0
        %1763 = vmatpush1.bf16.msra.mxu0 0
        %1764 = vmatprep.subr.bf16.mxu0 0
        %1765 = vmatpush1.bf16.msra.mxu0 0
        %1766 = vmatprep.subr.bf16.mxu0 0
        %1767 = vmatpush1.bf16.msra.mxu0 0
        %1768 = vmatprep.subr.bf16.mxu0 0
        %1769 = vmatpush1.bf16.msra.mxu0 0
        %1770 = vmatprep.subr.bf16.mxu0 0
        %1771 = vmatpush1.bf16.msra.mxu0 0
        %1772 = vmatprep.subr.bf16.mxu0 0
        %1773 = vmatpush1.bf16.msra.mxu0 0
        %1774 = vmatprep.mubr.bf16.mxu0 0
        %1775 = vmatmul.mubr.bf16.gmra.mrb[0].mxu0 %v1740
        %v1776 = vpop.f32.mrb[0].mxu0
        %v1777 = vadd.f32 0.0, %v1776
        %v1778 = vpop.f32.mrb[0].mxu0
        %v1779 = vpop.f32.mrb[0].mxu0
        %v1780 = vpop.f32.mrb[0].mxu0
        %1781 = vdwg.mxu0
        %v1782 = vadd.f32 %v1564, %v1777
        %1783 = vst.msk [vmem:[%s423] sm:$0xff] %vm445, %v1782
        %s1784 = sand.u32 %s254, 1
        %s1785 = scalar_lea.sflag [#allocation5], %s1784
        %s1786 = sand.u32 %s254, 1
        %s1787 = smul.addr %s1786, 8
        %s1788 = scalar_lea.vmem [#allocation6], %s1787
        %s1789 = sand.u32 %s31, 1
        %s1790 = scalar_lea.sflag [#allocation8], %s1789
        %s1791 = sand.u32 %s280, 1
        %s1792 = smul.addr %s1791, 32
        %s1793 = scalar_lea.vmem [#allocation7], %s1792
        %s1794 = sand.u32 %s31, 1
        %s1795 = scalar_lea.sflag [#allocation8], %s1794
        %s1796 = sand.u32 %s306, 1
        %s1797 = smul.addr %s1796, 32
        %s1798 = scalar_lea.vmem [#allocation9], %s1797
        // Predicated region
        $region65: #{tpu_custom_call.1} parent=59 // pred_check
          %p1799 = pneg %p264
        $region66: #{tpu_custom_call.1} parent=59 // pred_check_branch
          %1801 = sbr.rel (%p1799) target = $region68
        $region67: #{tpu_custom_call.1} parent=59 // pred_region
          %s1803 = ssub.s32 128, 128
          %1804 = vsyncadd %s1785, %s1803
          %s1805 = smul.addr %s31, 128
          %s1806 = scalar_lea.hbm %s10, %s1805
          %s1808 = sshll.u32 %s1788, 4
          %s1809 = int_to_ptr.vmem [resolvable:$true] %s1808
          %1811 = dma.vmem_to_hbm [thread:$0]  %s1809, 128, %s1806, %s1785
        $region68: #{tpu_custom_call.1} parent=59 // pred_fallthru
          _
        // Predicated region
        $region69: #{tpu_custom_call.1} parent=59 // pred_check
          %p1812 = pneg %p290
        $region70: #{tpu_custom_call.1} parent=59 // pred_check_branch
          %1814 = sbr.rel (%p1812) target = $region72
        $region71: #{tpu_custom_call.1} parent=59 // pred_region
          %s1816 = ssub.s32 512, 512
          %1817 = vsyncadd %s1790, %s1816
          %s1818 = smul.addr %s31, 4
          %s1819 = smul.addr %s1818, 128
          %s1820 = scalar_lea.hbm %s11, %s1819
          %s1821 = sshll.u32 %s1793, 4
          %s1822 = int_to_ptr.vmem [resolvable:$true] %s1821
          %1827 = dma.vmem_to_hbm [thread:$0]  %s1822, 512, %s1820, %s1790, 128, 128, 8
        $region72: #{tpu_custom_call.1} parent=59 // pred_fallthru
          _
        // Predicated region
        $region73: #{tpu_custom_call.1} parent=59 // pred_check
          %p1828 = pneg %p316
        $region74: #{tpu_custom_call.1} parent=59 // pred_check_branch
          %1830 = sbr.rel (%p1828) target = $region76
        $region75: #{tpu_custom_call.1} parent=59 // pred_region
          %s1832 = ssub.s32 512, 512
          %1833 = vsyncadd %s1795, %s1832
          %s1834 = smul.addr %s31, 4
          %s1835 = smul.addr %s1834, 128
          %s1836 = scalar_lea.hbm %s12, %s1835
          %s1837 = sshll.u32 %s1798, 4
          %s1838 = int_to_ptr.vmem [resolvable:$true] %s1837
          %1843 = dma.vmem_to_hbm [thread:$0]  %s1838, 512, %s1836, %s1795, 128, 128, 8
        $region76: #{tpu_custom_call.1} parent=59 // pred_fallthru
          _
      $region60: #{tpu_custom_call.1} parent=5 // pred_fallthru
        _
      %p1844 = scmp.le.s32.totalorder 2, %s26
      // Predicated region
      $region77: #{tpu_custom_call.1} parent=5 // pred_check
        %p1845 = pneg %p1844
      $region78: #{tpu_custom_call.1} parent=5 // pred_check_branch
        %1847 = sbr.rel (%p1845) target = $region80
      $region79: #{tpu_custom_call.1} parent=5 // pred_region
        %s1848 = ssub.s32 %s26, 2
        // Predicated region
        $region81: #{tpu_custom_call.1} parent=79 // pred_check
          %p1849 = pneg %p270
        $region82: #{tpu_custom_call.1} parent=79 // pred_check_branch
          %1851 = sbr.rel (%p1849) target = $region84
        $region83: #{tpu_custom_call.1} parent=79 // pred_region
          %s1852 = sand.u32 %s255, 1
          %s1853 = scalar_lea.sflag [#allocation5], %s1852
          %s1854 = sand.u32 %s255, 1
          %s1855 = smul.addr %s1854, 8
          %s1856 = scalar_lea.vmem [#allocation6], %s1855
          %1857 = dma.done %s1853, 128
        $region84: #{tpu_custom_call.1} parent=79 // pred_fallthru
          _
        // Predicated region
        $region85: #{tpu_custom_call.1} parent=79 // pred_check
          %p1858 = pneg %p296
        $region86: #{tpu_custom_call.1} parent=79 // pred_check_branch
          %1860 = sbr.rel (%p1858) target = $region88
        $region87: #{tpu_custom_call.1} parent=79 // pred_region
          %s1861 = sand.u32 %s32, 1
          %s1862 = scalar_lea.sflag [#allocation8], %s1861
          %s1863 = sand.u32 %s281, 1
          %s1864 = smul.addr %s1863, 32
          %s1865 = scalar_lea.vmem [#allocation7], %s1864
          %1866 = dma.done %s1862, 512
        $region88: #{tpu_custom_call.1} parent=79 // pred_fallthru
          _
        // Predicated region
        $region89: #{tpu_custom_call.1} parent=79 // pred_check
          %p1867 = pneg %p322
        $region90: #{tpu_custom_call.1} parent=79 // pred_check_branch
          %1869 = sbr.rel (%p1867) target = $region92
        $region91: #{tpu_custom_call.1} parent=79 // pred_region
          %s1870 = sand.u32 %s32, 1
          %s1871 = scalar_lea.sflag [#allocation8], %s1870
          %s1872 = sand.u32 %s307, 1
          %s1873 = smul.addr %s1872, 32
          %s1874 = scalar_lea.vmem [#allocation9], %s1873
          %1875 = dma.done %s1871, 512
        $region92: #{tpu_custom_call.1} parent=79 // pred_fallthru
          _
      $region80: #{tpu_custom_call.1} parent=5 // pred_fallthru
        _
    $region6: #{tpu_custom_call.1} parent=1 // loop_footer
      %s30 = sadd.s32 1, %s26
    $region7: #{tpu_custom_call.1} parent=1 // loop_footer_branch
      %25 = sbr.rel target = $region3
    $region8: #{tpu_custom_call.1} parent=1 // loop_exit
      _
    %1876 = vsyncpa [#allocation4], 1
    %s1877 = scalar_lea.sflag [#allocation4], 1
    %1878 = vsyncpa %s1877, 1
    %1879 = vsyncpa [#allocation5], 1
    %s1880 = scalar_lea.sflag [#allocation5], 1
    %1881 = vsyncpa %s1880, 1
    %1882 = vsyncpa [#allocation8], 1
    %s1883 = scalar_lea.sflag [#allocation8], 1
    %1884 = vsyncpa %s1883, 1

</llo_original>
